<compile_context>
chip_gen: v6e
topology: v6e:2x2x1
jax: 0.10.0
libtpu: 0.0.40
codegen_flags: <defaults>
</compile_context>

<pallas_src>
import jax
import jax.numpy as jnp
from jax.experimental import pallas as pl
from jax.experimental.pallas import tpu as pltpu

KSIZE = 7
PAD = KSIZE // 2


def tsa_kernel(x_ref, w1_ref, w2t_ref, b2_ref, b1_ref, wc_ref, bc_ref, o_ref):
    # x_ref / o_ref : (TB, C, L) VMEM blocks
    # w1_ref        : (Cr, C, 1) VMEM   (fc1.weight, row r -> (C, 1) column)
    # w2t_ref       : (Cr, C, 1) VMEM   (fc2.weight transposed, row r -> (C, 1))
    # b2_ref        : (C, 1)     VMEM
    # b1_ref        : (Cr,)      SMEM scalars
    # wc_ref        : (2*KSIZE,) SMEM scalars  [max taps | avg taps]
    # bc_ref        : (1,)       SMEM scalar
    TB, C, L = x_ref.shape
    Cr = w1_ref.shape[0]

    x = x_ref[...]                                           # (TB, C, L)

    # ---------- Squeeze-Excitation (batched over the whole tile, VPU only) ----------
    y = jnp.mean(x, axis=-1, keepdims=True)                  # (TB, C, 1) global avg pool
    logit = b2_ref[...]                                      # (C, 1) -> broadcasts
    for r in range(Cr):
        w1_row = w1_ref[r]                                   # (C, 1)
        t = jnp.sum(y * w1_row, axis=1, keepdims=True)       # (TB, 1, 1)
        h = jnp.maximum(t + b1_ref[r], 0.0)                  # ReLU, (TB, 1, 1)
        logit = logit + w2t_ref[r] * h                       # (TB, C, 1)
    s = jax.nn.sigmoid(logit)                                # (TB, C, 1)
    x_se = x * s                                             # (TB, C, L)

    # ---------- Spatial attention: channel max/mean, k=7 conv (zero pad), sigmoid ----------
    mx = jnp.max(x_se, axis=1, keepdims=True)                # (TB, 1, L)
    av = jnp.mean(x_se, axis=1, keepdims=True)               # (TB, 1, L)
    packed = jnp.concatenate([mx, av], axis=1)               # (TB, 2, L): [max; avg]

    # Per-tap weight planes with the zero-padding validity folded in (constants
    # built once per grid step, shared across the whole batch tile).
    lane = jax.lax.broadcasted_iota(jnp.int32, (1, 1, L), 2)
    taps = []
    for k in range(KSIZE):
        off = k - PAD
        src = lane + off
        validf = ((src >= 0) & (src < L)).astype(jnp.float32)         # (1, 1, L)
        wplane = jnp.concatenate(
            [wc_ref[k] * validf, wc_ref[KSIZE + k] * validf], axis=1)  # (1, 2, L)
        taps.append((off, wplane))

    # Center tap initializes the accumulator (no roll, mask is all-ones).
    acc = taps[PAD][1] * packed                              # (TB, 2, L)
    for off, wplane in taps:
        if off == 0:
            continue
        shifted = pltpu.roll(packed, shift=(-off) % L, axis=2)
        acc = acc + wplane * shifted

    att = jax.nn.sigmoid(jnp.sum(acc, axis=1, keepdims=True) + bc_ref[0])  # (TB, 1, L)

    o_ref[...] = (x_se * att).astype(o_ref.dtype)


def _pick_batch_tile(B, C, L, batch_tile):
    if batch_tile is None:
        # Keep the grid a multiple of 2 when possible (both v7x TCs busy,
        # DMA/compute overlap on v5e); collapse to grid=1 only for tiny/odd B.
        TB = B // 2 if (B >= 2 and B % 2 == 0) else B
    else:
        TB = max(1, min(batch_tile, B))
    while B % TB:
        TB -= 1
    # VMEM-scaling guard: in + out blocks, double-buffered, f32.  Keeps the
    # tiling inside the scoped VMEM budget if C / L are scaled up (v7x: 64 MiB
    # physical, 32 MiB scoped default).
    budget = 24 * 1024 * 1024
    while TB > 1 and 4 * TB * C * L * 4 > budget:
        nt = TB // 2
        while nt > 1 and B % nt:
            nt -= 1
        if nt == TB:
            break
        TB = max(1, nt)
    return TB


def task_specific_attention(x, w1, b1, w2, b2, wc, bc, *, batch_tile=None):
    """x: (B, C, L) f32. Params follow PyTorch shapes (reshaped for the kernel)."""
    B, C, L = x.shape
    Cr = w1.shape[0]

    TB = _pick_batch_tile(B, C, L, batch_tile)

    w1_3 = w1.reshape(Cr, C, 1)                    # fc1.weight rows as (C, 1) columns
    w2t_3 = jnp.transpose(w2).reshape(Cr, C, 1)    # fc2.weight columns as (C, 1)
    b2c = b2.reshape(C, 1)
    wc_flat = wc.reshape(-1)                       # (2*KSIZE,): [max taps | avg taps]

    # Advisory cost estimate (mem-bound elementwise/reduction workload).
    flops = 6 * B * C * L + 4 * B * KSIZE * L + 4 * B * C * Cr
    bytes_accessed = 2 * B * C * L * 4 + (2 * Cr * C + C + Cr + 2 * KSIZE + 1) * 4
    transcendentals = B * (C + L)

    return pl.pallas_call(
        tsa_kernel,
        out_shape=jax.ShapeDtypeStruct((B, C, L), x.dtype),
        grid_spec=pltpu.PrefetchScalarGridSpec(
            num_scalar_prefetch=0,
            grid=(B // TB,),
            in_specs=[
                pl.BlockSpec((TB, C, L), lambda b: (b, 0, 0)),      # x
                pl.BlockSpec((Cr, C, 1), lambda b: (0, 0, 0)),      # w1
                pl.BlockSpec((Cr, C, 1), lambda b: (0, 0, 0)),      # w2^T
                pl.BlockSpec((C, 1), lambda b: (0, 0)),             # b2
                pl.BlockSpec(memory_space=pltpu.MemorySpace.SMEM),  # b1
                pl.BlockSpec(memory_space=pltpu.MemorySpace.SMEM),  # conv weights
                pl.BlockSpec(memory_space=pltpu.MemorySpace.SMEM),  # conv bias
            ],
            out_specs=pl.BlockSpec((TB, C, L), lambda b: (b, 0, 0)),
        ),
        compiler_params=pltpu.CompilerParams(
            dimension_semantics=("parallel",),
            vmem_limit_bytes=32 * 1024 * 1024,
        ),
        cost_estimate=pl.CostEstimate(
            flops=flops,
            transcendentals=transcendentals,
            bytes_accessed=bytes_accessed,
        ),
    )(x, w1_3, w2t_3, b2c, b1, wc_flat, bc)


def reference_forward(x, w1, b1, w2, b2, wc, bc):
    """Pure-JAX reference mirroring the PyTorch module."""
    y = jnp.mean(x, axis=-1)                                  # (B, C)
    h = jnp.maximum(y @ w1.T + b1, 0.0)
    s = jax.nn.sigmoid(h @ w2.T + b2)
    x_se = x * s[:, :, None]
    mx = jnp.max(x_se, axis=1, keepdims=True)
    av = jnp.mean(x_se, axis=1, keepdims=True)
    cat = jnp.concatenate([mx, av], axis=1)                   # (B, 2, L)
    att = jax.lax.conv_general_dilated(
        cat, wc, window_strides=(1,), padding=[(PAD, PAD)],
        dimension_numbers=("NCH", "OIH", "NCH")) + bc[None, :, None]
    att = jax.nn.sigmoid(att)
    return x_se * att


if __name__ == "__main__":
    B, C, L = 16, 32, 128
    reduction = 16
    Cr = C // reduction

    key = jax.random.PRNGKey(0)
    kx, k1, k2, k3, k4, k5, k6 = jax.random.split(key, 7)

    x = jax.random.normal(kx, (B, C, L), dtype=jnp.float32)

    # Deterministic synthetic parameters (PyTorch shapes):
    w1 = 0.1 * jax.random.normal(k1, (Cr, C), dtype=jnp.float32)        # fc1.weight
    b1 = 0.1 * jax.random.normal(k2, (Cr,), dtype=jnp.float32)          # fc1.bias
    w2 = 0.1 * jax.random.normal(k3, (C, Cr), dtype=jnp.float32)        # fc2.weight
    b2 = 0.1 * jax.random.normal(k4, (C,), dtype=jnp.float32)           # fc2.bias
    wc = 0.1 * jax.random.normal(k5, (1, 2, KSIZE), dtype=jnp.float32)  # conv.weight
    bc = 0.1 * jax.random.normal(k6, (1,), dtype=jnp.float32)           # conv.bias

    out = task_specific_attention(x, w1, b1, w2, b2, wc, bc)
    out = jax.block_until_ready(out)

    ref = reference_forward(x, w1, b1, w2, b2, wc, bc)
    assert out.shape == (B, C, L)
    assert jnp.allclose(out, ref, atol=2e-5, rtol=2e-5), "mismatch vs reference"

    print("KERNEL_OK")
</pallas_src>

<mosaic_0001>
module attributes {stable_mosaic.version = 11 : i64} {
  func.func @tsa_kernel(%arg0: i32, %arg1: memref<8x32x128xf32, #tpu.memory_space<vmem>>, %arg2: memref<2x32x1xf32, #tpu.memory_space<vmem>>, %arg3: memref<2x32x1xf32, #tpu.memory_space<vmem>>, %arg4: memref<32x1xf32, #tpu.memory_space<vmem>>, %arg5: memref<2xf32, #tpu.memory_space<smem>>, %arg6: memref<14xf32, #tpu.memory_space<smem>>, %arg7: memref<1xf32, #tpu.memory_space<smem>>, %arg8: memref<8x32x128xf32, #tpu.memory_space<vmem>>) attributes {dimension_semantics = [#tpu.dimension_semantics<parallel>], iteration_bounds = array<i64: 2>, scalar_prefetch = 0 : i64, scratch_operands = 0 : i64, tpu.core_type = #tpu.core_type<tc>, window_params = [{transform_indices = @transform_0, window_bounds = array<i64: 8, 32, 128>}, {pipeline_mode = #tpu.pipeline_mode<synchronous>, transform_indices = @transform_1, window_bounds = array<i64: 2, 32, 1>}, {pipeline_mode = #tpu.pipeline_mode<synchronous>, transform_indices = @transform_2, window_bounds = array<i64: 2, 32, 1>}, {pipeline_mode = #tpu.pipeline_mode<synchronous>, transform_indices = @transform_3, window_bounds = array<i64: 32, 1>}, {transform_indices = @transform_4, window_bounds = array<i64: 2>}, {transform_indices = @transform_5, window_bounds = array<i64: 14>}, {transform_indices = @transform_6, window_bounds = array<i64: 1>}, {transform_indices = @transform_7, window_bounds = array<i64: 8, 32, 128>}]} {
    %c0 = arith.constant 0 : index
    %c0_0 = arith.constant 0 : index
    %c0_1 = arith.constant 0 : index
    %0 = vector.load %arg1[%c0, %c0_0, %c0_1] : memref<8x32x128xf32, #tpu.memory_space<vmem>>, vector<8x32x128xf32>
    %cst = arith.constant dense<0.000000e+00> : vector<8x32xf32>
    %1 = vector.multi_reduction <add>, %0, %cst [2] : vector<8x32x128xf32> to vector<8x32xf32>
    %2 = vector.shape_cast %1 : vector<8x32xf32> to vector<8x32x1xf32>
    %cst_2 = arith.constant 1.280000e+02 : f32
    %3 = vector.broadcast %cst_2 : f32 to vector<8x32x1xf32>
    %4 = arith.divf %2, %3 : vector<8x32x1xf32>
    %c0_3 = arith.constant 0 : index
    %c0_4 = arith.constant 0 : index
    %5 = vector.load %arg4[%c0_3, %c0_4] : memref<32x1xf32, #tpu.memory_space<vmem>>, vector<32x1xf32>
    %c0_5 = arith.constant 0 : index
    %c0_6 = arith.constant 0 : index
    %c0_7 = arith.constant 0 : index
    %6 = vector.load %arg2[%c0_5, %c0_6, %c0_7] : memref<2x32x1xf32, #tpu.memory_space<vmem>>, vector<1x32x1xf32>
    %7 = vector.shape_cast %6 : vector<1x32x1xf32> to vector<32x1xf32>
    %8 = vector.shape_cast %7 : vector<32x1xf32> to vector<1x32x1xf32>
    %9 = vector.broadcast %8 : vector<1x32x1xf32> to vector<8x32x1xf32>
    %10 = arith.mulf %4, %9 : vector<8x32x1xf32>
    %cst_8 = arith.constant dense<0.000000e+00> : vector<8x1xf32>
    %11 = vector.multi_reduction <add>, %10, %cst_8 [1] : vector<8x32x1xf32> to vector<8x1xf32>
    %12 = vector.shape_cast %11 : vector<8x1xf32> to vector<8x1x1xf32>
    %c0_9 = arith.constant 0 : index
    %13 = memref.load %arg5[%c0_9] : memref<2xf32, #tpu.memory_space<smem>>
    %14 = vector.broadcast %13 : f32 to vector<8x1x1xf32>
    %15 = arith.addf %12, %14 : vector<8x1x1xf32>
    %cst_10 = arith.constant 0.000000e+00 : f32
    %16 = vector.broadcast %cst_10 : f32 to vector<8x1x1xf32>
    %17 = arith.maximumf %15, %16 : vector<8x1x1xf32>
    %c0_11 = arith.constant 0 : index
    %c0_12 = arith.constant 0 : index
    %c0_13 = arith.constant 0 : index
    %18 = vector.load %arg3[%c0_11, %c0_12, %c0_13] : memref<2x32x1xf32, #tpu.memory_space<vmem>>, vector<1x32x1xf32>
    %19 = vector.shape_cast %18 : vector<1x32x1xf32> to vector<32x1xf32>
    %20 = vector.shape_cast %19 : vector<32x1xf32> to vector<1x32x1xf32>
    %21 = vector.broadcast %20 : vector<1x32x1xf32> to vector<8x32x1xf32>
    %22 = vector.broadcast %17 : vector<8x1x1xf32> to vector<8x32x1xf32>
    %23 = arith.mulf %21, %22 : vector<8x32x1xf32>
    %24 = vector.shape_cast %5 : vector<32x1xf32> to vector<1x32x1xf32>
    %25 = vector.broadcast %24 : vector<1x32x1xf32> to vector<8x32x1xf32>
    %26 = arith.addf %25, %23 : vector<8x32x1xf32>
    %c1 = arith.constant 1 : index
    %c0_14 = arith.constant 0 : index
    %c0_15 = arith.constant 0 : index
    %27 = vector.load %arg2[%c1, %c0_14, %c0_15] : memref<2x32x1xf32, #tpu.memory_space<vmem>>, vector<1x32x1xf32>
    %28 = vector.shape_cast %27 : vector<1x32x1xf32> to vector<32x1xf32>
    %29 = vector.shape_cast %28 : vector<32x1xf32> to vector<1x32x1xf32>
    %30 = vector.broadcast %29 : vector<1x32x1xf32> to vector<8x32x1xf32>
    %31 = arith.mulf %4, %30 : vector<8x32x1xf32>
    %cst_16 = arith.constant dense<0.000000e+00> : vector<8x1xf32>
    %32 = vector.multi_reduction <add>, %31, %cst_16 [1] : vector<8x32x1xf32> to vector<8x1xf32>
    %33 = vector.shape_cast %32 : vector<8x1xf32> to vector<8x1x1xf32>
    %c1_17 = arith.constant 1 : index
    %34 = memref.load %arg5[%c1_17] : memref<2xf32, #tpu.memory_space<smem>>
    %35 = vector.broadcast %34 : f32 to vector<8x1x1xf32>
    %36 = arith.addf %33, %35 : vector<8x1x1xf32>
    %cst_18 = arith.constant 0.000000e+00 : f32
    %37 = vector.broadcast %cst_18 : f32 to vector<8x1x1xf32>
    %38 = arith.maximumf %36, %37 : vector<8x1x1xf32>
    %c1_19 = arith.constant 1 : index
    %c0_20 = arith.constant 0 : index
    %c0_21 = arith.constant 0 : index
    %39 = vector.load %arg3[%c1_19, %c0_20, %c0_21] : memref<2x32x1xf32, #tpu.memory_space<vmem>>, vector<1x32x1xf32>
    %40 = vector.shape_cast %39 : vector<1x32x1xf32> to vector<32x1xf32>
    %41 = vector.shape_cast %40 : vector<32x1xf32> to vector<1x32x1xf32>
    %42 = vector.broadcast %41 : vector<1x32x1xf32> to vector<8x32x1xf32>
    %43 = vector.broadcast %38 : vector<8x1x1xf32> to vector<8x32x1xf32>
    %44 = arith.mulf %42, %43 : vector<8x32x1xf32>
    %45 = arith.addf %26, %44 : vector<8x32x1xf32>
    %46 = arith.negf %45 : vector<8x32x1xf32>
    %47 = math.exp %46 : vector<8x32x1xf32>
    %cst_22 = arith.constant 1.000000e+00 : f32
    %48 = vector.broadcast %cst_22 : f32 to vector<8x32x1xf32>
    %49 = arith.addf %48, %47 : vector<8x32x1xf32>
    %50 = arith.divf %48, %49 : vector<8x32x1xf32>
    %51 = vector.broadcast %50 : vector<8x32x1xf32> to vector<8x32x128xf32>
    %52 = arith.mulf %0, %51 : vector<8x32x128xf32>
    %cst_23 = arith.constant dense<0xFF800000> : vector<8x128xf32>
    %53 = vector.multi_reduction <maximumf>, %52, %cst_23 [1] : vector<8x32x128xf32> to vector<8x128xf32>
    %54 = vector.shape_cast %53 : vector<8x128xf32> to vector<8x1x128xf32>
    %cst_24 = arith.constant dense<0.000000e+00> : vector<8x128xf32>
    %55 = vector.multi_reduction <add>, %52, %cst_24 [1] : vector<8x32x128xf32> to vector<8x128xf32>
    %56 = vector.shape_cast %55 : vector<8x128xf32> to vector<8x1x128xf32>
    %cst_25 = arith.constant 3.200000e+01 : f32
    %57 = vector.broadcast %cst_25 : f32 to vector<8x1x128xf32>
    %58 = arith.divf %56, %57 : vector<8x1x128xf32>
    %59 = tpu.concatenate %54, %58 in 1 : vector<8x1x128xf32>, vector<8x1x128xf32> -> vector<8x2x128xf32>
    %60 = tpu.iota {dimensions = array<i32: 2>} : vector<1x1x128xi32>
    %c-3_i32 = arith.constant -3 : i32
    %61 = vector.broadcast %c-3_i32 : i32 to vector<1x1x128xi32>
    %62 = arith.addi %60, %61 : vector<1x1x128xi32>
    %c0_i32 = arith.constant 0 : i32
    %63 = vector.broadcast %c0_i32 : i32 to vector<1x1x128xi32>
    %64 = arith.cmpi sge, %62, %63 : vector<1x1x128xi32>
    %c128_i32 = arith.constant 128 : i32
    %65 = vector.broadcast %c128_i32 : i32 to vector<1x1x128xi32>
    %66 = arith.cmpi slt, %62, %65 : vector<1x1x128xi32>
    %67 = arith.andi %64, %66 : vector<1x1x128xi1>
    %68 = arith.extui %67 : vector<1x1x128xi1> to vector<1x1x128xi32>
    %69 = arith.sitofp %68 : vector<1x1x128xi32> to vector<1x1x128xf32>
    %c0_26 = arith.constant 0 : index
    %70 = memref.load %arg6[%c0_26] : memref<14xf32, #tpu.memory_space<smem>>
    %71 = vector.broadcast %70 : f32 to vector<1x1x128xf32>
    %72 = arith.mulf %71, %69 : vector<1x1x128xf32>
    %c7 = arith.constant 7 : index
    %73 = memref.load %arg6[%c7] : memref<14xf32, #tpu.memory_space<smem>>
    %74 = vector.broadcast %73 : f32 to vector<1x1x128xf32>
    %75 = arith.mulf %74, %69 : vector<1x1x128xf32>
    %76 = tpu.concatenate %72, %75 in 1 : vector<1x1x128xf32>, vector<1x1x128xf32> -> vector<1x2x128xf32>
    %c-2_i32 = arith.constant -2 : i32
    %77 = vector.broadcast %c-2_i32 : i32 to vector<1x1x128xi32>
    %78 = arith.addi %60, %77 : vector<1x1x128xi32>
    %c0_i32_27 = arith.constant 0 : i32
    %79 = vector.broadcast %c0_i32_27 : i32 to vector<1x1x128xi32>
    %80 = arith.cmpi sge, %78, %79 : vector<1x1x128xi32>
    %c128_i32_28 = arith.constant 128 : i32
    %81 = vector.broadcast %c128_i32_28 : i32 to vector<1x1x128xi32>
    %82 = arith.cmpi slt, %78, %81 : vector<1x1x128xi32>
    %83 = arith.andi %80, %82 : vector<1x1x128xi1>
    %84 = arith.extui %83 : vector<1x1x128xi1> to vector<1x1x128xi32>
    %85 = arith.sitofp %84 : vector<1x1x128xi32> to vector<1x1x128xf32>
    %c1_29 = arith.constant 1 : index
    %86 = memref.load %arg6[%c1_29] : memref<14xf32, #tpu.memory_space<smem>>
    %87 = vector.broadcast %86 : f32 to vector<1x1x128xf32>
    %88 = arith.mulf %87, %85 : vector<1x1x128xf32>
    %c8 = arith.constant 8 : index
    %89 = memref.load %arg6[%c8] : memref<14xf32, #tpu.memory_space<smem>>
    %90 = vector.broadcast %89 : f32 to vector<1x1x128xf32>
    %91 = arith.mulf %90, %85 : vector<1x1x128xf32>
    %92 = tpu.concatenate %88, %91 in 1 : vector<1x1x128xf32>, vector<1x1x128xf32> -> vector<1x2x128xf32>
    %c-1_i32 = arith.constant -1 : i32
    %93 = vector.broadcast %c-1_i32 : i32 to vector<1x1x128xi32>
    %94 = arith.addi %60, %93 : vector<1x1x128xi32>
    %c0_i32_30 = arith.constant 0 : i32
    %95 = vector.broadcast %c0_i32_30 : i32 to vector<1x1x128xi32>
    %96 = arith.cmpi sge, %94, %95 : vector<1x1x128xi32>
    %c128_i32_31 = arith.constant 128 : i32
    %97 = vector.broadcast %c128_i32_31 : i32 to vector<1x1x128xi32>
    %98 = arith.cmpi slt, %94, %97 : vector<1x1x128xi32>
    %99 = arith.andi %96, %98 : vector<1x1x128xi1>
    %100 = arith.extui %99 : vector<1x1x128xi1> to vector<1x1x128xi32>
    %101 = arith.sitofp %100 : vector<1x1x128xi32> to vector<1x1x128xf32>
    %c2 = arith.constant 2 : index
    %102 = memref.load %arg6[%c2] : memref<14xf32, #tpu.memory_space<smem>>
    %103 = vector.broadcast %102 : f32 to vector<1x1x128xf32>
    %104 = arith.mulf %103, %101 : vector<1x1x128xf32>
    %c9 = arith.constant 9 : index
    %105 = memref.load %arg6[%c9] : memref<14xf32, #tpu.memory_space<smem>>
    %106 = vector.broadcast %105 : f32 to vector<1x1x128xf32>
    %107 = arith.mulf %106, %101 : vector<1x1x128xf32>
    %108 = tpu.concatenate %104, %107 in 1 : vector<1x1x128xf32>, vector<1x1x128xf32> -> vector<1x2x128xf32>
    %c0_i32_32 = arith.constant 0 : i32
    %109 = vector.broadcast %c0_i32_32 : i32 to vector<1x1x128xi32>
    %110 = arith.addi %60, %109 : vector<1x1x128xi32>
    %c0_i32_33 = arith.constant 0 : i32
    %111 = vector.broadcast %c0_i32_33 : i32 to vector<1x1x128xi32>
    %112 = arith.cmpi sge, %110, %111 : vector<1x1x128xi32>
    %c128_i32_34 = arith.constant 128 : i32
    %113 = vector.broadcast %c128_i32_34 : i32 to vector<1x1x128xi32>
    %114 = arith.cmpi slt, %110, %113 : vector<1x1x128xi32>
    %115 = arith.andi %112, %114 : vector<1x1x128xi1>
    %116 = arith.extui %115 : vector<1x1x128xi1> to vector<1x1x128xi32>
    %117 = arith.sitofp %116 : vector<1x1x128xi32> to vector<1x1x128xf32>
    %c3 = arith.constant 3 : index
    %118 = memref.load %arg6[%c3] : memref<14xf32, #tpu.memory_space<smem>>
    %119 = vector.broadcast %118 : f32 to vector<1x1x128xf32>
    %120 = arith.mulf %119, %117 : vector<1x1x128xf32>
    %c10 = arith.constant 10 : index
    %121 = memref.load %arg6[%c10] : memref<14xf32, #tpu.memory_space<smem>>
    %122 = vector.broadcast %121 : f32 to vector<1x1x128xf32>
    %123 = arith.mulf %122, %117 : vector<1x1x128xf32>
    %124 = tpu.concatenate %120, %123 in 1 : vector<1x1x128xf32>, vector<1x1x128xf32> -> vector<1x2x128xf32>
    %c1_i32 = arith.constant 1 : i32
    %125 = vector.broadcast %c1_i32 : i32 to vector<1x1x128xi32>
    %126 = arith.addi %60, %125 : vector<1x1x128xi32>
    %c0_i32_35 = arith.constant 0 : i32
    %127 = vector.broadcast %c0_i32_35 : i32 to vector<1x1x128xi32>
    %128 = arith.cmpi sge, %126, %127 : vector<1x1x128xi32>
    %c128_i32_36 = arith.constant 128 : i32
    %129 = vector.broadcast %c128_i32_36 : i32 to vector<1x1x128xi32>
    %130 = arith.cmpi slt, %126, %129 : vector<1x1x128xi32>
    %131 = arith.andi %128, %130 : vector<1x1x128xi1>
    %132 = arith.extui %131 : vector<1x1x128xi1> to vector<1x1x128xi32>
    %133 = arith.sitofp %132 : vector<1x1x128xi32> to vector<1x1x128xf32>
    %c4 = arith.constant 4 : index
    %134 = memref.load %arg6[%c4] : memref<14xf32, #tpu.memory_space<smem>>
    %135 = vector.broadcast %134 : f32 to vector<1x1x128xf32>
    %136 = arith.mulf %135, %133 : vector<1x1x128xf32>
    %c11 = arith.constant 11 : index
    %137 = memref.load %arg6[%c11] : memref<14xf32, #tpu.memory_space<smem>>
    %138 = vector.broadcast %137 : f32 to vector<1x1x128xf32>
    %139 = arith.mulf %138, %133 : vector<1x1x128xf32>
    %140 = tpu.concatenate %136, %139 in 1 : vector<1x1x128xf32>, vector<1x1x128xf32> -> vector<1x2x128xf32>
    %c2_i32 = arith.constant 2 : i32
    %141 = vector.broadcast %c2_i32 : i32 to vector<1x1x128xi32>
    %142 = arith.addi %60, %141 : vector<1x1x128xi32>
    %c0_i32_37 = arith.constant 0 : i32
    %143 = vector.broadcast %c0_i32_37 : i32 to vector<1x1x128xi32>
    %144 = arith.cmpi sge, %142, %143 : vector<1x1x128xi32>
    %c128_i32_38 = arith.constant 128 : i32
    %145 = vector.broadcast %c128_i32_38 : i32 to vector<1x1x128xi32>
    %146 = arith.cmpi slt, %142, %145 : vector<1x1x128xi32>
    %147 = arith.andi %144, %146 : vector<1x1x128xi1>
    %148 = arith.extui %147 : vector<1x1x128xi1> to vector<1x1x128xi32>
    %149 = arith.sitofp %148 : vector<1x1x128xi32> to vector<1x1x128xf32>
    %c5 = arith.constant 5 : index
    %150 = memref.load %arg6[%c5] : memref<14xf32, #tpu.memory_space<smem>>
    %151 = vector.broadcast %150 : f32 to vector<1x1x128xf32>
    %152 = arith.mulf %151, %149 : vector<1x1x128xf32>
    %c12 = arith.constant 12 : index
    %153 = memref.load %arg6[%c12] : memref<14xf32, #tpu.memory_space<smem>>
    %154 = vector.broadcast %153 : f32 to vector<1x1x128xf32>
    %155 = arith.mulf %154, %149 : vector<1x1x128xf32>
    %156 = tpu.concatenate %152, %155 in 1 : vector<1x1x128xf32>, vector<1x1x128xf32> -> vector<1x2x128xf32>
    %c3_i32 = arith.constant 3 : i32
    %157 = vector.broadcast %c3_i32 : i32 to vector<1x1x128xi32>
    %158 = arith.addi %60, %157 : vector<1x1x128xi32>
    %c0_i32_39 = arith.constant 0 : i32
    %159 = vector.broadcast %c0_i32_39 : i32 to vector<1x1x128xi32>
    %160 = arith.cmpi sge, %158, %159 : vector<1x1x128xi32>
    %c128_i32_40 = arith.constant 128 : i32
    %161 = vector.broadcast %c128_i32_40 : i32 to vector<1x1x128xi32>
    %162 = arith.cmpi slt, %158, %161 : vector<1x1x128xi32>
    %163 = arith.andi %160, %162 : vector<1x1x128xi1>
    %164 = arith.extui %163 : vector<1x1x128xi1> to vector<1x1x128xi32>
    %165 = arith.sitofp %164 : vector<1x1x128xi32> to vector<1x1x128xf32>
    %c6 = arith.constant 6 : index
    %166 = memref.load %arg6[%c6] : memref<14xf32, #tpu.memory_space<smem>>
    %167 = vector.broadcast %166 : f32 to vector<1x1x128xf32>
    %168 = arith.mulf %167, %165 : vector<1x1x128xf32>
    %c13 = arith.constant 13 : index
    %169 = memref.load %arg6[%c13] : memref<14xf32, #tpu.memory_space<smem>>
    %170 = vector.broadcast %169 : f32 to vector<1x1x128xf32>
    %171 = arith.mulf %170, %165 : vector<1x1x128xf32>
    %172 = tpu.concatenate %168, %171 in 1 : vector<1x1x128xf32>, vector<1x1x128xf32> -> vector<1x2x128xf32>
    %173 = vector.broadcast %124 : vector<1x2x128xf32> to vector<8x2x128xf32>
    %174 = arith.mulf %173, %59 : vector<8x2x128xf32>
    %c3_i32_41 = arith.constant 3 : i32
    %175 = tpu.dynamic_rotate %59 by %c3_i32_41 dim 2 : vector<8x2x128xf32>, i32 -> vector<8x2x128xf32>
    %176 = vector.broadcast %76 : vector<1x2x128xf32> to vector<8x2x128xf32>
    %177 = arith.mulf %176, %175 : vector<8x2x128xf32>
    %178 = arith.addf %174, %177 : vector<8x2x128xf32>
    %c2_i32_42 = arith.constant 2 : i32
    %179 = tpu.dynamic_rotate %59 by %c2_i32_42 dim 2 : vector<8x2x128xf32>, i32 -> vector<8x2x128xf32>
    %180 = vector.broadcast %92 : vector<1x2x128xf32> to vector<8x2x128xf32>
    %181 = arith.mulf %180, %179 : vector<8x2x128xf32>
    %182 = arith.addf %178, %181 : vector<8x2x128xf32>
    %c1_i32_43 = arith.constant 1 : i32
    %183 = tpu.dynamic_rotate %59 by %c1_i32_43 dim 2 : vector<8x2x128xf32>, i32 -> vector<8x2x128xf32>
    %184 = vector.broadcast %108 : vector<1x2x128xf32> to vector<8x2x128xf32>
    %185 = arith.mulf %184, %183 : vector<8x2x128xf32>
    %186 = arith.addf %182, %185 : vector<8x2x128xf32>
    %c127_i32 = arith.constant 127 : i32
    %187 = tpu.dynamic_rotate %59 by %c127_i32 dim 2 : vector<8x2x128xf32>, i32 -> vector<8x2x128xf32>
    %188 = vector.broadcast %140 : vector<1x2x128xf32> to vector<8x2x128xf32>
    %189 = arith.mulf %188, %187 : vector<8x2x128xf32>
    %190 = arith.addf %186, %189 : vector<8x2x128xf32>
    %c126_i32 = arith.constant 126 : i32
    %191 = tpu.dynamic_rotate %59 by %c126_i32 dim 2 : vector<8x2x128xf32>, i32 -> vector<8x2x128xf32>
    %192 = vector.broadcast %156 : vector<1x2x128xf32> to vector<8x2x128xf32>
    %193 = arith.mulf %192, %191 : vector<8x2x128xf32>
    %194 = arith.addf %190, %193 : vector<8x2x128xf32>
    %c125_i32 = arith.constant 125 : i32
    %195 = tpu.dynamic_rotate %59 by %c125_i32 dim 2 : vector<8x2x128xf32>, i32 -> vector<8x2x128xf32>
    %196 = vector.broadcast %172 : vector<1x2x128xf32> to vector<8x2x128xf32>
    %197 = arith.mulf %196, %195 : vector<8x2x128xf32>
    %198 = arith.addf %194, %197 : vector<8x2x128xf32>
    %cst_44 = arith.constant dense<0.000000e+00> : vector<8x128xf32>
    %199 = vector.multi_reduction <add>, %198, %cst_44 [1] : vector<8x2x128xf32> to vector<8x128xf32>
    %200 = vector.shape_cast %199 : vector<8x128xf32> to vector<8x1x128xf32>
    %c0_45 = arith.constant 0 : index
    %201 = memref.load %arg7[%c0_45] : memref<1xf32, #tpu.memory_space<smem>>
    %202 = vector.broadcast %201 : f32 to vector<8x1x128xf32>
    %203 = arith.addf %200, %202 : vector<8x1x128xf32>
    %204 = arith.negf %203 : vector<8x1x128xf32>
    %205 = math.exp %204 : vector<8x1x128xf32>
    %cst_46 = arith.constant 1.000000e+00 : f32
    %206 = vector.broadcast %cst_46 : f32 to vector<8x1x128xf32>
    %207 = arith.addf %206, %205 : vector<8x1x128xf32>
    %208 = arith.divf %206, %207 : vector<8x1x128xf32>
    %209 = vector.broadcast %208 : vector<8x1x128xf32> to vector<8x32x128xf32>
    %210 = arith.mulf %52, %209 : vector<8x32x128xf32>
    %c0_47 = arith.constant 0 : index
    %c0_48 = arith.constant 0 : index
    %c0_49 = arith.constant 0 : index
    %211 = vector.load %arg8[%c0_47, %c0_48, %c0_49] : memref<8x32x128xf32, #tpu.memory_space<vmem>>, vector<8x32x128xf32>
    tpu.vector_store %arg8[%c0_47, %c0_48, %c0_49], %210 {strides = array<i32>} : memref<8x32x128xf32, #tpu.memory_space<vmem>>, vector<8x32x128xf32>,
    return
  }
  func.func @transform_0(%arg0: i32) -> (i32, i32, i32) {
    %c0_i32 = arith.constant 0 : i32
    %c0_i32_0 = arith.constant 0 : i32
    %c0_i32_1 = arith.constant 0 : i32
    return %arg0, %c0_i32, %c0_i32_0 : i32, i32, i32
  }
  func.func @transform_1(%arg0: i32) -> (i32, i32, i32) {
    %c0_i32 = arith.constant 0 : i32
    %c0_i32_0 = arith.constant 0 : i32
    %c0_i32_1 = arith.constant 0 : i32
    %c0_i32_2 = arith.constant 0 : i32
    return %c0_i32, %c0_i32_0, %c0_i32_1 : i32, i32, i32
  }
  func.func @transform_2(%arg0: i32) -> (i32, i32, i32) {
    %c0_i32 = arith.constant 0 : i32
    %c0_i32_0 = arith.constant 0 : i32
    %c0_i32_1 = arith.constant 0 : i32
    %c0_i32_2 = arith.constant 0 : i32
    return %c0_i32, %c0_i32_0, %c0_i32_1 : i32, i32, i32
  }
  func.func @transform_3(%arg0: i32) -> (i32, i32) {
    %c0_i32 = arith.constant 0 : i32
    %c0_i32_0 = arith.constant 0 : i32
    %c0_i32_1 = arith.constant 0 : i32
    return %c0_i32, %c0_i32_0 : i32, i32
  }
  func.func @transform_4(%arg0: i32) -> i32 {
    %c0_i32 = arith.constant 0 : i32
    %c0_i32_0 = arith.constant 0 : i32
    return %c0_i32 : i32
  }
  func.func @transform_5(%arg0: i32) -> i32 {
    %c0_i32 = arith.constant 0 : i32
    %c0_i32_0 = arith.constant 0 : i32
    return %c0_i32 : i32
  }
  func.func @transform_6(%arg0: i32) -> i32 {
    %c0_i32 = arith.constant 0 : i32
    %c0_i32_0 = arith.constant 0 : i32
    return %c0_i32 : i32
  }
  func.func @transform_7(%arg0: i32) -> (i32, i32, i32) {
    %c0_i32 = arith.constant 0 : i32
    %c0_i32_0 = arith.constant 0 : i32
    %c0_i32_1 = arith.constant 0 : i32
    return %arg0, %c0_i32, %c0_i32_0 : i32, i32, i32
  }
}

</mosaic_0001>

<llo_original>
// kernel: tpu_custom_call.1
$region0: #{tpu_custom_call.1}
  #allocation0 [shape = 'u32[]', space=smem, size = 0x4, offset = 0x4, fixed_abs, tag = 'smem constant byte address 0x4 - core index']
  #allocation1 [shape = 'u32[144,128]{1,0:T(1,128)}', space=vmem, size = 0x12000, scoped, tag = 'internal scratch']
  #allocation2 [shape = 'f32[1]{0:T(128)S(6)}', space=smem, size = 0x200, scoped, tag = 'scoped memory for tpu_custom_call.1']
  %s0 = inlined_call_operand.hbm [shape: f32[16,32,128], index: 0, kind: input, shape index: {}]
  %s1 = inlined_call_operand.vmem [shape: f32[2,32,1], index: 1, kind: input, shape index: {}]
  %s2 = inlined_call_operand.vmem [shape: f32[2,32,1], index: 2, kind: input, shape index: {}]
  %s3 = inlined_call_operand.vmem [shape: f32[32,1], index: 3, kind: input, shape index: {}]
  %s4 = inlined_call_operand.vmem [shape: f32[2], index: 4, kind: input, shape index: {}]
  %s5 = inlined_call_operand.vmem [shape: f32[14], index: 5, kind: input, shape index: {}]
  %s6 = inlined_call_operand.<no memory space> [shape: f32[1], index: 6, kind: input, shape index: {}]
  %s7 = inlined_call_operand.hbm [shape: f32[16,32,128], index: 7, kind: output, shape index: {}]
  %s8 = sld [smem:[#allocation0]]
  $region73: #{tpu_custom_call.1} parent=0
    _
  %s10 = ssub.s32 1, %s8
  %s11 = scalar_select 0, %s10, %s8
  %12 = sst [smem:[#allocation2]] %s6
  $region1: #{tpu_custom_call.1} parent=0
    #allocation3 [shape = 'u8[262144]{0}', space=vmem, size = 0x40000, scoped, tag = 'input window, operand 0']
    #allocation4 [shape = 's32[2]{0}', space=sflag, size = 0x8, scoped, tag = 'scoped memory for tpu_custom_call.1']
    #allocation5 [shape = 's32[2]{0}', space=sflag, size = 0x8, scoped, tag = 'scoped memory for tpu_custom_call.1']
    #allocation6 [shape = 's32[2]{0}', space=sflag, size = 0x8, scoped, tag = 'scoped memory for tpu_custom_call.1']
    #allocation7 [shape = 'u8[512]{0}', space=smem, size = 0x200, scoped, tag = 'input window, operand 4, single buffered']
    #allocation8 [shape = 'u8[512]{0}', space=smem, size = 0x200, scoped, tag = 'input window, operand 5, single buffered']
    #allocation9 [shape = 's32[1]{0}', space=sflag, size = 0x4, scoped, tag = 'scoped memory for tpu_custom_call.1']
    #allocation10 [shape = 'u8[262144]{0}', space=vmem, size = 0x40000, scoped, tag = 'output window, operand 0']
    %13 = vsyncpa [#allocation4], 0
    %s14 = scalar_lea.sflag [#allocation4], 1
    %15 = vsyncpa %s14, 0
    %16 = vsyncpa [#allocation6], 0
    %17 = vsyncpa [#allocation9], 0
    %18 = vsyncpa [#allocation5], 0
    %s19 = scalar_lea.sflag [#allocation5], 1
    %20 = vsyncpa %s19, 0
    loop: start=0, step=1, limit=4
    $region2: #{tpu_custom_call.1} parent=1 // loop_pre_header
      _
    $region3: #{tpu_custom_call.1} parent=1 // loop_header
      %s22 = sphi 0, %s26
      %p23 = scmp.ge.s32.totalorder %s22, 4
      %s32 = sphi 0, %s34
      %s35 = sphi 0, %s32
      %s36 = sphi 0, %s35
      %s52 = sphi 0, %s36
      %s56 = sphi 0, %s56
      %s58 = sphi 0, %s56
      %s59 = sphi 0, %s58
      %s73 = sphi 0, %s59
      %s77 = sphi 0, %s77
      %s79 = sphi 0, %s77
      %s80 = sphi 0, %s79
      %s94 = sphi 0, %s80
      %s98 = sphi 0, %s98
      %s100 = sphi 0, %s98
      %s101 = sphi 0, %s100
      %s115 = sphi 0, %s101
      %s119 = sphi 0, %s119
      %s121 = sphi 0, %s119
      %s122 = sphi 0, %s121
      %s136 = sphi 0, %s122
      %s140 = sphi 0, %s140
      %s142 = sphi 0, %s140
      %s143 = sphi 0, %s142
      %s157 = sphi 0, %s143
      %s161 = sphi 0, %s161
      %s163 = sphi 0, %s161
      %s164 = sphi 0, %s163
      %s178 = sphi 0, %s164
      %s184 = sphi 0, %s186
      %s187 = sphi 0, %s184
      %s188 = sphi 0, %s187
      %s204 = sphi 0, %s188
    $region4: #{tpu_custom_call.1} parent=1 // loop_header_branch
      %25 = sbr.rel (%p23) target = $region8
    $region5: #{tpu_custom_call.1} parent=1 // loop_body
      %s27 = ssub.s32 %s22, 1
      %s28 = ssub.s32 %s22, 2
      %s29 = sadd.s32 %s22, 1
      %s30 = ssub.s32 %s22, %s29
      %p31 = scmp.eq.s32.totalorder %s30, 0
      %s33 = sadd.s32 %s32, 1
      %s34 = scalar_select %p31, %s32, %s33
      %p37 = pneg %p31
      %p38 = scmp.eq.s32.totalorder %s22, 1
      %p39 = por %p37, %p38
      %p40 = scmp.ne.s32.totalorder %s32, %s35
      %p41 = scmp.eq.s32.totalorder %s22, 0
      %p42 = por %p40, %p41
      %p43 = scmp.ne.s32.totalorder %s32, %s35
      %p44 = scmp.eq.s32.totalorder %s27, 1
      %p45 = por %p43, %p44
      %p46 = scmp.ne.s32.totalorder %s35, %s36
      %p47 = scmp.eq.s32.totalorder %s27, 0
      %p48 = por %p46, %p47
      %p49 = scmp.ne.s32.totalorder %s35, %s36
      %p50 = scmp.eq.s32.totalorder %s28, 1
      %p51 = por %p49, %p50
      %p53 = scmp.ne.s32.totalorder %s36, %s52
      %p54 = scmp.eq.s32.totalorder %s28, 0
      %p55 = por %p53, %p54
      %s57 = sadd.s32 %s56, 1
      %p60 = scmp.eq.s32.totalorder %s22, 1
      %p61 = scmp.ne.s32.totalorder %s56, %s58
      %p62 = scmp.eq.s32.totalorder %s22, 0
      %p63 = por %p61, %p62
      %p64 = scmp.ne.s32.totalorder %s56, %s58
      %p65 = scmp.eq.s32.totalorder %s27, 1
      %p66 = por %p64, %p65
      %p67 = scmp.ne.s32.totalorder %s58, %s59
      %p68 = scmp.eq.s32.totalorder %s27, 0
      %p69 = por %p67, %p68
      %p70 = scmp.ne.s32.totalorder %s58, %s59
      %p71 = scmp.eq.s32.totalorder %s28, 1
      %p72 = por %p70, %p71
      %p74 = scmp.ne.s32.totalorder %s59, %s73
      %p75 = scmp.eq.s32.totalorder %s28, 0
      %p76 = por %p74, %p75
      %s78 = sadd.s32 %s77, 1
      %p81 = scmp.eq.s32.totalorder %s22, 1
      %p82 = scmp.ne.s32.totalorder %s77, %s79
      %p83 = scmp.eq.s32.totalorder %s22, 0
      %p84 = por %p82, %p83
      %p85 = scmp.ne.s32.totalorder %s77, %s79
      %p86 = scmp.eq.s32.totalorder %s27, 1
      %p87 = por %p85, %p86
      %p88 = scmp.ne.s32.totalorder %s79, %s80
      %p89 = scmp.eq.s32.totalorder %s27, 0
      %p90 = por %p88, %p89
      %p91 = scmp.ne.s32.totalorder %s79, %s80
      %p92 = scmp.eq.s32.totalorder %s28, 1
      %p93 = por %p91, %p92
      %p95 = scmp.ne.s32.totalorder %s80, %s94
      %p96 = scmp.eq.s32.totalorder %s28, 0
      %p97 = por %p95, %p96
      %s99 = sadd.s32 %s98, 1
      %p102 = scmp.eq.s32.totalorder %s22, 1
      %p103 = scmp.ne.s32.totalorder %s98, %s100
      %p104 = scmp.eq.s32.totalorder %s22, 0
      %p105 = por %p103, %p104
      %p106 = scmp.ne.s32.totalorder %s98, %s100
      %p107 = scmp.eq.s32.totalorder %s27, 1
      %p108 = por %p106, %p107
      %p109 = scmp.ne.s32.totalorder %s100, %s101
      %p110 = scmp.eq.s32.totalorder %s27, 0
      %p111 = por %p109, %p110
      %p112 = scmp.ne.s32.totalorder %s100, %s101
      %p113 = scmp.eq.s32.totalorder %s28, 1
      %p114 = por %p112, %p113
      %p116 = scmp.ne.s32.totalorder %s101, %s115
      %p117 = scmp.eq.s32.totalorder %s28, 0
      %p118 = por %p116, %p117
      %s120 = sadd.s32 %s119, 1
      %p123 = scmp.eq.s32.totalorder %s22, 1
      %p124 = scmp.ne.s32.totalorder %s119, %s121
      %p125 = scmp.eq.s32.totalorder %s22, 0
      %p126 = por %p124, %p125
      %p127 = scmp.ne.s32.totalorder %s119, %s121
      %p128 = scmp.eq.s32.totalorder %s27, 1
      %p129 = por %p127, %p128
      %p130 = scmp.ne.s32.totalorder %s121, %s122
      %p131 = scmp.eq.s32.totalorder %s27, 0
      %p132 = por %p130, %p131
      %p133 = scmp.ne.s32.totalorder %s121, %s122
      %p134 = scmp.eq.s32.totalorder %s28, 1
      %p135 = por %p133, %p134
      %p137 = scmp.ne.s32.totalorder %s122, %s136
      %p138 = scmp.eq.s32.totalorder %s28, 0
      %p139 = por %p137, %p138
      %s141 = sadd.s32 %s140, 1
      %p144 = scmp.eq.s32.totalorder %s22, 1
      %p145 = scmp.ne.s32.totalorder %s140, %s142
      %p146 = scmp.eq.s32.totalorder %s22, 0
      %p147 = por %p145, %p146
      %p148 = scmp.ne.s32.totalorder %s140, %s142
      %p149 = scmp.eq.s32.totalorder %s27, 1
      %p150 = por %p148, %p149
      %p151 = scmp.ne.s32.totalorder %s142, %s143
      %p152 = scmp.eq.s32.totalorder %s27, 0
      %p153 = por %p151, %p152
      %p154 = scmp.ne.s32.totalorder %s142, %s143
      %p155 = scmp.eq.s32.totalorder %s28, 1
      %p156 = por %p154, %p155
      %p158 = scmp.ne.s32.totalorder %s143, %s157
      %p159 = scmp.eq.s32.totalorder %s28, 0
      %p160 = por %p158, %p159
      %s162 = sadd.s32 %s161, 1
      %p165 = scmp.eq.s32.totalorder %s22, 1
      %p166 = scmp.ne.s32.totalorder %s161, %s163
      %p167 = scmp.eq.s32.totalorder %s22, 0
      %p168 = por %p166, %p167
      %p169 = scmp.ne.s32.totalorder %s161, %s163
      %p170 = scmp.eq.s32.totalorder %s27, 1
      %p171 = por %p169, %p170
      %p172 = scmp.ne.s32.totalorder %s163, %s164
      %p173 = scmp.eq.s32.totalorder %s27, 0
      %p174 = por %p172, %p173
      %p175 = scmp.ne.s32.totalorder %s163, %s164
      %p176 = scmp.eq.s32.totalorder %s28, 1
      %p177 = por %p175, %p176
      %p179 = scmp.ne.s32.totalorder %s164, %s178
      %p180 = scmp.eq.s32.totalorder %s28, 0
      %p181 = por %p179, %p180
      %s182 = ssub.s32 %s22, %s29
      %p183 = scmp.eq.s32.totalorder %s182, 0
      %s185 = sadd.s32 %s184, 1
      %s186 = scalar_select %p183, %s184, %s185
      %p189 = pneg %p183
      %p190 = scmp.eq.s32.totalorder %s22, 1
      %p191 = por %p189, %p190
      %p192 = scmp.ne.s32.totalorder %s184, %s187
      %p193 = scmp.eq.s32.totalorder %s22, 0
      %p194 = por %p192, %p193
      %p195 = scmp.ne.s32.totalorder %s184, %s187
      %p196 = scmp.eq.s32.totalorder %s27, 1
      %p197 = por %p195, %p196
      %p198 = scmp.ne.s32.totalorder %s187, %s188
      %p199 = scmp.eq.s32.totalorder %s27, 0
      %p200 = por %p198, %p199
      %p201 = scmp.ne.s32.totalorder %s187, %s188
      %p202 = scmp.eq.s32.totalorder %s28, 1
      %p203 = por %p201, %p202
      %p205 = scmp.ne.s32.totalorder %s188, %s204
      %p206 = scmp.eq.s32.totalorder %s28, 0
      %p207 = por %p205, %p206
      %p208 = scmp.le.s32.totalorder 1, %s22
      %p209 = scmp.lt.s32.totalorder %s22, 3
      %p210 = pnand %p208, %p209
      %p211 = pneg %p210
      // Predicated region
      $region9: #{tpu_custom_call.1} parent=5 // pred_check
        _
      $region10: #{tpu_custom_call.1} parent=5 // pred_check_branch
        %213 = sbr.rel (%p210) target = $region12
      $region11: #{tpu_custom_call.1} parent=5 // pred_region
        %s214 = ssub.s32 %s22, 1
        // Predicated region
        $region13: #{tpu_custom_call.1} parent=11 // pred_check
          %p215 = pneg %p69
        $region14: #{tpu_custom_call.1} parent=11 // pred_check_branch
          %217 = sbr.rel (%p215) target = $region16
        $region15: #{tpu_custom_call.1} parent=11 // pred_region
          _
        $region16: #{tpu_custom_call.1} parent=11 // pred_fallthru
          _
        // Predicated region
        $region17: #{tpu_custom_call.1} parent=11 // pred_check
          %p218 = pneg %p90
        $region18: #{tpu_custom_call.1} parent=11 // pred_check_branch
          %220 = sbr.rel (%p218) target = $region20
        $region19: #{tpu_custom_call.1} parent=11 // pred_region
          _
        $region20: #{tpu_custom_call.1} parent=11 // pred_fallthru
          _
        // Predicated region
        $region21: #{tpu_custom_call.1} parent=11 // pred_check
          %p221 = pneg %p111
        $region22: #{tpu_custom_call.1} parent=11 // pred_check_branch
          %223 = sbr.rel (%p221) target = $region24
        $region23: #{tpu_custom_call.1} parent=11 // pred_region
          _
        $region24: #{tpu_custom_call.1} parent=11 // pred_fallthru
          _
        // Predicated region
        $region25: #{tpu_custom_call.1} parent=11 // pred_check
          %p224 = pneg %p132
        $region26: #{tpu_custom_call.1} parent=11 // pred_check_branch
          %226 = sbr.rel (%p224) target = $region28
        $region27: #{tpu_custom_call.1} parent=11 // pred_region
          %s228 = ssub.s32 16, 16
          %229 = vsyncadd [#allocation6], %s228
          %s231 = sshll.u32 %s4, 4
          %s232 = int_to_ptr.vmem [resolvable:$true] %s231
          %234 = dma.vmem_to_smem %s232, 16, [#allocation7], [#allocation6]
        $region28: #{tpu_custom_call.1} parent=11 // pred_fallthru
          _
        // Predicated region
        $region29: #{tpu_custom_call.1} parent=11 // pred_check
          %p235 = pneg %p153
        $region30: #{tpu_custom_call.1} parent=11 // pred_check_branch
          %237 = sbr.rel (%p235) target = $region32
        $region31: #{tpu_custom_call.1} parent=11 // pred_region
          %s239 = ssub.s32 16, 16
          %240 = vsyncadd [#allocation9], %s239
          %s242 = sshll.u32 %s5, 4
          %s243 = int_to_ptr.vmem [resolvable:$true] %s242
          %245 = dma.vmem_to_smem %s243, 16, [#allocation8], [#allocation9]
        $region32: #{tpu_custom_call.1} parent=11 // pred_fallthru
          _
        // Predicated region
        $region33: #{tpu_custom_call.1} parent=11 // pred_check
          %p246 = pneg %p174
        $region34: #{tpu_custom_call.1} parent=11 // pred_check_branch
          %248 = sbr.rel (%p246) target = $region36
        $region35: #{tpu_custom_call.1} parent=11 // pred_region
          _
        $region36: #{tpu_custom_call.1} parent=11 // pred_fallthru
          _
      $region12: #{tpu_custom_call.1} parent=5 // pred_fallthru
        _
      %p249 = scmp.lt.s32.totalorder %s22, 2
      // Predicated region
      $region37: #{tpu_custom_call.1} parent=5 // pred_check
        %p250 = pneg %p249
      $region38: #{tpu_custom_call.1} parent=5 // pred_check_branch
        %252 = sbr.rel (%p250) target = $region40
      $region39: #{tpu_custom_call.1} parent=5 // pred_region
        // Predicated region
        $region41: #{tpu_custom_call.1} parent=39 // pred_check
          %p253 = pneg %p42
        $region42: #{tpu_custom_call.1} parent=39 // pred_check_branch
          %255 = sbr.rel (%p253) target = $region44
        $region43: #{tpu_custom_call.1} parent=39 // pred_region
          %s256 = sand.u32 %s32, 1
          %s257 = scalar_lea.sflag [#allocation4], %s256
          %s258 = sand.u32 %s32, 1
          %s259 = smul.addr %s258, 256
          %s260 = scalar_lea.vmem [#allocation3], %s259
          %s261 = smul.u32 8, %s22
          %s263 = ssub.s32 4096, 4096
          %264 = vsyncadd %s257, %s263
          %s265 = smul.addr %s261, 4
          %s266 = smul.addr %s265, 128
          %s267 = scalar_lea.hbm %s0, %s266
          %s268 = sshll.u32 %s260, 4
          %s269 = int_to_ptr.vmem [resolvable:$true] %s268
          %274 = dma.hbm_to_vmem [thread:$0]  %s267, 4096, %s269, %s257, 128, 128, 8
        $region44: #{tpu_custom_call.1} parent=39 // pred_fallthru
          _
      $region40: #{tpu_custom_call.1} parent=5 // pred_fallthru
        _
      %p275 = scmp.le.s32.totalorder 1, %s22
      %p276 = scmp.lt.s32.totalorder %s22, 3
      %p277 = pnand %p275, %p276
      %p278 = pneg %p277
      // Predicated region
      $region45: #{tpu_custom_call.1} parent=5 // pred_check
        _
      $region46: #{tpu_custom_call.1} parent=5 // pred_check_branch
        %280 = sbr.rel (%p277) target = $region48
      $region47: #{tpu_custom_call.1} parent=5 // pred_region
        %s281 = ssub.s32 %s22, 1
        %s282 = sand.u32 %s35, 1
        %s283 = scalar_lea.sflag [#allocation4], %s282
        %s284 = sand.u32 %s35, 1
        %s285 = smul.addr %s284, 256
        %s286 = scalar_lea.vmem [#allocation3], %s285
        // Predicated region
        $region49: #{tpu_custom_call.1} parent=47 // pred_check
          %p287 = pneg %p48
        $region50: #{tpu_custom_call.1} parent=47 // pred_check_branch
          %289 = sbr.rel (%p287) target = $region52
        $region51: #{tpu_custom_call.1} parent=47 // pred_region
          %290 = dma.done %s283, 4096
        $region52: #{tpu_custom_call.1} parent=47 // pred_fallthru
          _
        // Predicated region
        $region53: #{tpu_custom_call.1} parent=47 // pred_check
          %p291 = pneg %p132
        $region54: #{tpu_custom_call.1} parent=47 // pred_check_branch
          %293 = sbr.rel (%p291) target = $region56
        $region55: #{tpu_custom_call.1} parent=47 // pred_region
          %294 = dma.done [#allocation6], 16
        $region56: #{tpu_custom_call.1} parent=47 // pred_fallthru
          _
        // Predicated region
        $region57: #{tpu_custom_call.1} parent=47 // pred_check
          %p295 = pneg %p153
        $region58: #{tpu_custom_call.1} parent=47 // pred_check_branch
          %297 = sbr.rel (%p295) target = $region60
        $region59: #{tpu_custom_call.1} parent=47 // pred_region
          %298 = dma.done [#allocation9], 16
        $region60: #{tpu_custom_call.1} parent=47 // pred_fallthru
          _
        %299 = sfence
        %s300 = sand.u32 %s35, 1
        %s301 = scalar_lea.sflag [#allocation4], %s300
        %s302 = sand.u32 %s35, 1
        %s303 = smul.addr %s302, 256
        %s304 = scalar_lea.vmem [#allocation3], %s303
        %p305 = pneg %p48
        %p306 = pneg %p45
        %p307 = pneg %p69
        %p308 = pneg %p66
        %p309 = pneg %p90
        %p310 = pneg %p87
        %p311 = pneg %p111
        %p312 = pneg %p108
        %p313 = pneg %p132
        %p314 = pneg %p129
        %p315 = pneg %p153
        %p316 = pneg %p150
        %p317 = pneg %p174
        %p318 = pneg %p171
        %p319 = pneg %p200
        %p320 = pneg %p197
        %s321 = sand.u32 %s187, 1
        %s322 = scalar_lea.sflag [#allocation5], %s321
        %s323 = sand.u32 %s187, 1
        %s324 = smul.addr %s323, 256
        %s325 = scalar_lea.vmem [#allocation10], %s324
        %s326 = smul.u32 8, %s27
        %s327 = smul.u32 8, %s27
        %v328 = vld [vmem:[%s286] sm:$0xff]
        %v329 = vld [vmem:[%s286 + $0x8] sm:$0xff]
        %v330 = vld [vmem:[%s286 + $0x10] sm:$0xff]
        %v331 = vld [vmem:[%s286 + $0x18] sm:$0xff]
        %v332 = vld [vmem:[%s286 + $0x20] sm:$0xff]
        %v333 = vld [vmem:[%s286 + $0x28] sm:$0xff]
        %v334 = vld [vmem:[%s286 + $0x30] sm:$0xff]
        %v335 = vld [vmem:[%s286 + $0x38] sm:$0xff]
        %v336 = vld [vmem:[%s286 + $0x40] sm:$0xff]
        %v337 = vld [vmem:[%s286 + $0x48] sm:$0xff]
        %v338 = vld [vmem:[%s286 + $0x50] sm:$0xff]
        %v339 = vld [vmem:[%s286 + $0x58] sm:$0xff]
        %v340 = vld [vmem:[%s286 + $0x60] sm:$0xff]
        %v341 = vld [vmem:[%s286 + $0x68] sm:$0xff]
        %v342 = vld [vmem:[%s286 + $0x70] sm:$0xff]
        %v343 = vld [vmem:[%s286 + $0x78] sm:$0xff]
        %v344 = vld [vmem:[%s286 + $0x80] sm:$0xff]
        %v345 = vld [vmem:[%s286 + $0x88] sm:$0xff]
        %v346 = vld [vmem:[%s286 + $0x90] sm:$0xff]
        %v347 = vld [vmem:[%s286 + $0x98] sm:$0xff]
        %v348 = vld [vmem:[%s286 + $0xa0] sm:$0xff]
        %v349 = vld [vmem:[%s286 + $0xa8] sm:$0xff]
        %v350 = vld [vmem:[%s286 + $0xb0] sm:$0xff]
        %v351 = vld [vmem:[%s286 + $0xb8] sm:$0xff]
        %v352 = vld [vmem:[%s286 + $0xc0] sm:$0xff]
        %v353 = vld [vmem:[%s286 + $0xc8] sm:$0xff]
        %v354 = vld [vmem:[%s286 + $0xd0] sm:$0xff]
        %v355 = vld [vmem:[%s286 + $0xd8] sm:$0xff]
        %v356 = vld [vmem:[%s286 + $0xe0] sm:$0xff]
        %v357 = vld [vmem:[%s286 + $0xe8] sm:$0xff]
        %v358 = vld [vmem:[%s286 + $0xf0] sm:$0xff]
        %v359 = vld [vmem:[%s286 + $0xf8] sm:$0xff]
        %360 = vadd.xlane.f32.xlu0 %v328
        %v361 = vpop.xlane.xlu0 %360
        %362 = vadd.xlane.f32.xlu0 %v329
        %v363 = vpop.xlane.xlu0 %362
        %364 = vadd.xlane.f32.xlu0 %v330
        %v365 = vpop.xlane.xlu0 %364
        %366 = vadd.xlane.f32.xlu0 %v331
        %v367 = vpop.xlane.xlu0 %366
        %368 = vadd.xlane.f32.xlu0 %v332
        %v369 = vpop.xlane.xlu0 %368
        %370 = vadd.xlane.f32.xlu0 %v333
        %v371 = vpop.xlane.xlu0 %370
        %372 = vadd.xlane.f32.xlu0 %v334
        %v373 = vpop.xlane.xlu0 %372
        %374 = vadd.xlane.f32.xlu0 %v335
        %v375 = vpop.xlane.xlu0 %374
        %376 = vadd.xlane.f32.xlu0 %v336
        %v377 = vpop.xlane.xlu0 %376
        %378 = vadd.xlane.f32.xlu0 %v337
        %v379 = vpop.xlane.xlu0 %378
        %380 = vadd.xlane.f32.xlu0 %v338
        %v381 = vpop.xlane.xlu0 %380
        %382 = vadd.xlane.f32.xlu0 %v339
        %v383 = vpop.xlane.xlu0 %382
        %384 = vadd.xlane.f32.xlu0 %v340
        %v385 = vpop.xlane.xlu0 %384
        %386 = vadd.xlane.f32.xlu0 %v341
        %v387 = vpop.xlane.xlu0 %386
        %388 = vadd.xlane.f32.xlu0 %v342
        %v389 = vpop.xlane.xlu0 %388
        %390 = vadd.xlane.f32.xlu0 %v343
        %v391 = vpop.xlane.xlu0 %390
        %392 = vadd.xlane.f32.xlu0 %v344
        %v393 = vpop.xlane.xlu0 %392
        %394 = vadd.xlane.f32.xlu0 %v345
        %v395 = vpop.xlane.xlu0 %394
        %396 = vadd.xlane.f32.xlu0 %v346
        %v397 = vpop.xlane.xlu0 %396
        %398 = vadd.xlane.f32.xlu0 %v347
        %v399 = vpop.xlane.xlu0 %398
        %400 = vadd.xlane.f32.xlu0 %v348
        %v401 = vpop.xlane.xlu0 %400
        %402 = vadd.xlane.f32.xlu0 %v349
        %v403 = vpop.xlane.xlu0 %402
        %404 = vadd.xlane.f32.xlu0 %v350
        %v405 = vpop.xlane.xlu0 %404
        %406 = vadd.xlane.f32.xlu0 %v351
        %v407 = vpop.xlane.xlu0 %406
        %408 = vadd.xlane.f32.xlu0 %v352
        %v409 = vpop.xlane.xlu0 %408
        %410 = vadd.xlane.f32.xlu0 %v353
        %v411 = vpop.xlane.xlu0 %410
        %412 = vadd.xlane.f32.xlu0 %v354
        %v413 = vpop.xlane.xlu0 %412
        %414 = vadd.xlane.f32.xlu0 %v355
        %v415 = vpop.xlane.xlu0 %414
        %416 = vadd.xlane.f32.xlu0 %v356
        %v417 = vpop.xlane.xlu0 %416
        %418 = vadd.xlane.f32.xlu0 %v357
        %v419 = vpop.xlane.xlu0 %418
        %420 = vadd.xlane.f32.xlu0 %v358
        %v421 = vpop.xlane.xlu0 %420
        %422 = vadd.xlane.f32.xlu0 %v359
        %v423 = vpop.xlane.xlu0 %422
        %v424 = vrcp.pop 128.0
        %v425 = vmul.f32 %v361, %v424
        %v426 = vmul.f32 %v363, %v424
        %v427 = vmul.f32 %v365, %v424
        %v428 = vmul.f32 %v367, %v424
        %v429 = vmul.f32 %v369, %v424
        %v430 = vmul.f32 %v371, %v424
        %v431 = vmul.f32 %v373, %v424
        %v432 = vmul.f32 %v375, %v424
        %v433 = vmul.f32 %v377, %v424
        %v434 = vmul.f32 %v379, %v424
        %v435 = vmul.f32 %v381, %v424
        %v436 = vmul.f32 %v383, %v424
        %v437 = vmul.f32 %v385, %v424
        %v438 = vmul.f32 %v387, %v424
        %v439 = vmul.f32 %v389, %v424
        %v440 = vmul.f32 %v391, %v424
        %v441 = vmul.f32 %v393, %v424
        %v442 = vmul.f32 %v395, %v424
        %v443 = vmul.f32 %v397, %v424
        %v444 = vmul.f32 %v399, %v424
        %v445 = vmul.f32 %v401, %v424
        %v446 = vmul.f32 %v403, %v424
        %v447 = vmul.f32 %v405, %v424
        %v448 = vmul.f32 %v407, %v424
        %v449 = vmul.f32 %v409, %v424
        %v450 = vmul.f32 %v411, %v424
        %v451 = vmul.f32 %v413, %v424
        %v452 = vmul.f32 %v415, %v424
        %v453 = vmul.f32 %v417, %v424
        %v454 = vmul.f32 %v419, %v424
        %v455 = vmul.f32 %v421, %v424
        %v456 = vmul.f32 %v423, %v424
        %v457 = vld [vmem:[%s3] sm:$0xff]
        %v458 = vld [vmem:[%s3 + $0x8] sm:$0xff]
        %v459 = vld [vmem:[%s3 + $0x10] sm:$0xff]
        %v460 = vld [vmem:[%s3 + $0x18] sm:$0xff]
        %v461 = vld [vmem:[%s1] sm:$0xff]
        %v462 = vld [vmem:[%s1 + $0x8] sm:$0xff]
        %v463 = vld [vmem:[%s1 + $0x10] sm:$0xff]
        %v464 = vld [vmem:[%s1 + $0x18] sm:$0xff]
        %v465 = vmul.f32 %v425, %v461
        %v466 = vmul.f32 %v426, %v462
        %v467 = vmul.f32 %v427, %v463
        %v468 = vmul.f32 %v428, %v464
        %v469 = vmul.f32 %v429, %v461
        %v470 = vmul.f32 %v430, %v462
        %v471 = vmul.f32 %v431, %v463
        %v472 = vmul.f32 %v432, %v464
        %v473 = vmul.f32 %v433, %v461
        %v474 = vmul.f32 %v434, %v462
        %v475 = vmul.f32 %v435, %v463
        %v476 = vmul.f32 %v436, %v464
        %v477 = vmul.f32 %v437, %v461
        %v478 = vmul.f32 %v438, %v462
        %v479 = vmul.f32 %v439, %v463
        %v480 = vmul.f32 %v440, %v464
        %v481 = vmul.f32 %v441, %v461
        %v482 = vmul.f32 %v442, %v462
        %v483 = vmul.f32 %v443, %v463
        %v484 = vmul.f32 %v444, %v464
        %v485 = vmul.f32 %v445, %v461
        %v486 = vmul.f32 %v446, %v462
        %v487 = vmul.f32 %v447, %v463
        %v488 = vmul.f32 %v448, %v464
        %v489 = vmul.f32 %v449, %v461
        %v490 = vmul.f32 %v450, %v462
        %v491 = vmul.f32 %v451, %v463
        %v492 = vmul.f32 %v452, %v464
        %v493 = vmul.f32 %v453, %v461
        %v494 = vmul.f32 %v454, %v462
        %v495 = vmul.f32 %v455, %v463
        %v496 = vmul.f32 %v456, %v464
        %vm497 = vcmask 7168
        %v498 = vsel %vm497, %v465, 0.0
        %v499 = vsel %vm497, %v466, 0.0
        %v500 = vadd.f32 %v498, %v499
        %v501 = vsel %vm497, %v467, 0.0
        %v502 = vadd.f32 %v500, %v501
        %v503 = vsel %vm497, %v468, 0.0
        %v504 = vadd.f32 %v502, %v503
        %v505 = vrot.slane %v504, 4
        %v506 = vadd.f32 %v504, %v505
        %v507 = vrot.slane %v506, 2
        %v508 = vadd.f32 %v506, %v507
        %v509 = vrot.slane %v508, 1
        %v510 = vadd.f32 %v508, %v509
        %v511 = vsel %vm497, %v469, 0.0
        %v512 = vsel %vm497, %v470, 0.0
        %v513 = vadd.f32 %v511, %v512
        %v514 = vsel %vm497, %v471, 0.0
        %v515 = vadd.f32 %v513, %v514
        %v516 = vsel %vm497, %v472, 0.0
        %v517 = vadd.f32 %v515, %v516
        %v518 = vrot.slane %v517, 4
        %v519 = vadd.f32 %v517, %v518
        %v520 = vrot.slane %v519, 2
        %v521 = vadd.f32 %v519, %v520
        %v522 = vrot.slane %v521, 1
        %v523 = vadd.f32 %v521, %v522
        %v524 = vsel %vm497, %v473, 0.0
        %v525 = vsel %vm497, %v474, 0.0
        %v526 = vadd.f32 %v524, %v525
        %v527 = vsel %vm497, %v475, 0.0
        %v528 = vadd.f32 %v526, %v527
        %v529 = vsel %vm497, %v476, 0.0
        %v530 = vadd.f32 %v528, %v529
        %v531 = vrot.slane %v530, 4
        %v532 = vadd.f32 %v530, %v531
        %v533 = vrot.slane %v532, 2
        %v534 = vadd.f32 %v532, %v533
        %v535 = vrot.slane %v534, 1
        %v536 = vadd.f32 %v534, %v535
        %v537 = vsel %vm497, %v477, 0.0
        %v538 = vsel %vm497, %v478, 0.0
        %v539 = vadd.f32 %v537, %v538
        %v540 = vsel %vm497, %v479, 0.0
        %v541 = vadd.f32 %v539, %v540
        %v542 = vsel %vm497, %v480, 0.0
        %v543 = vadd.f32 %v541, %v542
        %v544 = vrot.slane %v543, 4
        %v545 = vadd.f32 %v543, %v544
        %v546 = vrot.slane %v545, 2
        %v547 = vadd.f32 %v545, %v546
        %v548 = vrot.slane %v547, 1
        %v549 = vadd.f32 %v547, %v548
        %v550 = vsel %vm497, %v481, 0.0
        %v551 = vsel %vm497, %v482, 0.0
        %v552 = vadd.f32 %v550, %v551
        %v553 = vsel %vm497, %v483, 0.0
        %v554 = vadd.f32 %v552, %v553
        %v555 = vsel %vm497, %v484, 0.0
        %v556 = vadd.f32 %v554, %v555
        %v557 = vrot.slane %v556, 4
        %v558 = vadd.f32 %v556, %v557
        %v559 = vrot.slane %v558, 2
        %v560 = vadd.f32 %v558, %v559
        %v561 = vrot.slane %v560, 1
        %v562 = vadd.f32 %v560, %v561
        %v563 = vsel %vm497, %v485, 0.0
        %v564 = vsel %vm497, %v486, 0.0
        %v565 = vadd.f32 %v563, %v564
        %v566 = vsel %vm497, %v487, 0.0
        %v567 = vadd.f32 %v565, %v566
        %v568 = vsel %vm497, %v488, 0.0
        %v569 = vadd.f32 %v567, %v568
        %v570 = vrot.slane %v569, 4
        %v571 = vadd.f32 %v569, %v570
        %v572 = vrot.slane %v571, 2
        %v573 = vadd.f32 %v571, %v572
        %v574 = vrot.slane %v573, 1
        %v575 = vadd.f32 %v573, %v574
        %v576 = vsel %vm497, %v489, 0.0
        %v577 = vsel %vm497, %v490, 0.0
        %v578 = vadd.f32 %v576, %v577
        %v579 = vsel %vm497, %v491, 0.0
        %v580 = vadd.f32 %v578, %v579
        %v581 = vsel %vm497, %v492, 0.0
        %v582 = vadd.f32 %v580, %v581
        %v583 = vrot.slane %v582, 4
        %v584 = vadd.f32 %v582, %v583
        %v585 = vrot.slane %v584, 2
        %v586 = vadd.f32 %v584, %v585
        %v587 = vrot.slane %v586, 1
        %v588 = vadd.f32 %v586, %v587
        %v589 = vsel %vm497, %v493, 0.0
        %v590 = vsel %vm497, %v494, 0.0
        %v591 = vadd.f32 %v589, %v590
        %v592 = vsel %vm497, %v495, 0.0
        %v593 = vadd.f32 %v591, %v592
        %v594 = vsel %vm497, %v496, 0.0
        %v595 = vadd.f32 %v593, %v594
        %v596 = vrot.slane %v595, 4
        %v597 = vadd.f32 %v595, %v596
        %v598 = vrot.slane %v597, 2
        %v599 = vadd.f32 %v597, %v598
        %v600 = vrot.slane %v599, 1
        %v601 = vadd.f32 %v599, %v600
        %s602 = sld [smem:[#allocation7]]
        %v603 = vstv %s602
        %v604 = vadd.f32 %v510, %v603
        %v605 = vadd.f32 %v523, %v603
        %v606 = vadd.f32 %v536, %v603
        %v607 = vadd.f32 %v549, %v603
        %v608 = vadd.f32 %v562, %v603
        %v609 = vadd.f32 %v575, %v603
        %v610 = vadd.f32 %v588, %v603
        %v611 = vadd.f32 %v601, %v603
        %v612 = vmax.f32 %v604, 0.0
        %v613 = vmax.f32 %v605, 0.0
        %v614 = vmax.f32 %v606, 0.0
        %v615 = vmax.f32 %v607, 0.0
        %v616 = vmax.f32 %v608, 0.0
        %v617 = vmax.f32 %v609, 0.0
        %v618 = vmax.f32 %v610, 0.0
        %v619 = vmax.f32 %v611, 0.0
        %v620 = vld [vmem:[%s2] sm:$0xff]
        %v621 = vld [vmem:[%s2 + $0x8] sm:$0xff]
        %v622 = vld [vmem:[%s2 + $0x10] sm:$0xff]
        %v623 = vld [vmem:[%s2 + $0x18] sm:$0xff]
        %v624 = vmul.f32 %v620, %v612
        %v625 = vmul.f32 %v621, %v612
        %v626 = vmul.f32 %v622, %v612
        %v627 = vmul.f32 %v623, %v612
        %v628 = vmul.f32 %v620, %v613
        %v629 = vmul.f32 %v621, %v613
        %v630 = vmul.f32 %v622, %v613
        %v631 = vmul.f32 %v623, %v613
        %v632 = vmul.f32 %v620, %v614
        %v633 = vmul.f32 %v621, %v614
        %v634 = vmul.f32 %v622, %v614
        %v635 = vmul.f32 %v623, %v614
        %v636 = vmul.f32 %v620, %v615
        %v637 = vmul.f32 %v621, %v615
        %v638 = vmul.f32 %v622, %v615
        %v639 = vmul.f32 %v623, %v615
        %v640 = vmul.f32 %v620, %v616
        %v641 = vmul.f32 %v621, %v616
        %v642 = vmul.f32 %v622, %v616
        %v643 = vmul.f32 %v623, %v616
        %v644 = vmul.f32 %v620, %v617
        %v645 = vmul.f32 %v621, %v617
        %v646 = vmul.f32 %v622, %v617
        %v647 = vmul.f32 %v623, %v617
        %v648 = vmul.f32 %v620, %v618
        %v649 = vmul.f32 %v621, %v618
        %v650 = vmul.f32 %v622, %v618
        %v651 = vmul.f32 %v623, %v618
        %v652 = vmul.f32 %v620, %v619
        %v653 = vmul.f32 %v621, %v619
        %v654 = vmul.f32 %v622, %v619
        %v655 = vmul.f32 %v623, %v619
        %v656 = vadd.f32 %v457, %v624
        %v657 = vadd.f32 %v458, %v625
        %v658 = vadd.f32 %v459, %v626
        %v659 = vadd.f32 %v460, %v627
        %v660 = vadd.f32 %v457, %v628
        %v661 = vadd.f32 %v458, %v629
        %v662 = vadd.f32 %v459, %v630
        %v663 = vadd.f32 %v460, %v631
        %v664 = vadd.f32 %v457, %v632
        %v665 = vadd.f32 %v458, %v633
        %v666 = vadd.f32 %v459, %v634
        %v667 = vadd.f32 %v460, %v635
        %v668 = vadd.f32 %v457, %v636
        %v669 = vadd.f32 %v458, %v637
        %v670 = vadd.f32 %v459, %v638
        %v671 = vadd.f32 %v460, %v639
        %v672 = vadd.f32 %v457, %v640
        %v673 = vadd.f32 %v458, %v641
        %v674 = vadd.f32 %v459, %v642
        %v675 = vadd.f32 %v460, %v643
        %v676 = vadd.f32 %v457, %v644
        %v677 = vadd.f32 %v458, %v645
        %v678 = vadd.f32 %v459, %v646
        %v679 = vadd.f32 %v460, %v647
        %v680 = vadd.f32 %v457, %v648
        %v681 = vadd.f32 %v458, %v649
        %v682 = vadd.f32 %v459, %v650
        %v683 = vadd.f32 %v460, %v651
        %v684 = vadd.f32 %v457, %v652
        %v685 = vadd.f32 %v458, %v653
        %v686 = vadd.f32 %v459, %v654
        %v687 = vadd.f32 %v460, %v655
        %s688 = scalar_lea.vmem %s1, 32
        %v689 = vld [vmem:[%s688] sm:$0xff]
        %v690 = vld [vmem:[%s688 + $0x8] sm:$0xff]
        %v691 = vld [vmem:[%s688 + $0x10] sm:$0xff]
        %v692 = vld [vmem:[%s688 + $0x18] sm:$0xff]
        %v693 = vmul.f32 %v425, %v689
        %v694 = vmul.f32 %v426, %v690
        %v695 = vmul.f32 %v427, %v691
        %v696 = vmul.f32 %v428, %v692
        %v697 = vmul.f32 %v429, %v689
        %v698 = vmul.f32 %v430, %v690
        %v699 = vmul.f32 %v431, %v691
        %v700 = vmul.f32 %v432, %v692
        %v701 = vmul.f32 %v433, %v689
        %v702 = vmul.f32 %v434, %v690
        %v703 = vmul.f32 %v435, %v691
        %v704 = vmul.f32 %v436, %v692
        %v705 = vmul.f32 %v437, %v689
        %v706 = vmul.f32 %v438, %v690
        %v707 = vmul.f32 %v439, %v691
        %v708 = vmul.f32 %v440, %v692
        %v709 = vmul.f32 %v441, %v689
        %v710 = vmul.f32 %v442, %v690
        %v711 = vmul.f32 %v443, %v691
        %v712 = vmul.f32 %v444, %v692
        %v713 = vmul.f32 %v445, %v689
        %v714 = vmul.f32 %v446, %v690
        %v715 = vmul.f32 %v447, %v691
        %v716 = vmul.f32 %v448, %v692
        %v717 = vmul.f32 %v449, %v689
        %v718 = vmul.f32 %v450, %v690
        %v719 = vmul.f32 %v451, %v691
        %v720 = vmul.f32 %v452, %v692
        %v721 = vmul.f32 %v453, %v689
        %v722 = vmul.f32 %v454, %v690
        %v723 = vmul.f32 %v455, %v691
        %v724 = vmul.f32 %v456, %v692
        %v725 = vsel %vm497, %v693, 0.0
        %v726 = vsel %vm497, %v694, 0.0
        %v727 = vadd.f32 %v725, %v726
        %v728 = vsel %vm497, %v695, 0.0
        %v729 = vadd.f32 %v727, %v728
        %v730 = vsel %vm497, %v696, 0.0
        %v731 = vadd.f32 %v729, %v730
        %v732 = vrot.slane %v731, 4
        %v733 = vadd.f32 %v731, %v732
        %v734 = vrot.slane %v733, 2
        %v735 = vadd.f32 %v733, %v734
        %v736 = vrot.slane %v735, 1
        %v737 = vadd.f32 %v735, %v736
        %v738 = vsel %vm497, %v697, 0.0
        %v739 = vsel %vm497, %v698, 0.0
        %v740 = vadd.f32 %v738, %v739
        %v741 = vsel %vm497, %v699, 0.0
        %v742 = vadd.f32 %v740, %v741
        %v743 = vsel %vm497, %v700, 0.0
        %v744 = vadd.f32 %v742, %v743
        %v745 = vrot.slane %v744, 4
        %v746 = vadd.f32 %v744, %v745
        %v747 = vrot.slane %v746, 2
        %v748 = vadd.f32 %v746, %v747
        %v749 = vrot.slane %v748, 1
        %v750 = vadd.f32 %v748, %v749
        %v751 = vsel %vm497, %v701, 0.0
        %v752 = vsel %vm497, %v702, 0.0
        %v753 = vadd.f32 %v751, %v752
        %v754 = vsel %vm497, %v703, 0.0
        %v755 = vadd.f32 %v753, %v754
        %v756 = vsel %vm497, %v704, 0.0
        %v757 = vadd.f32 %v755, %v756
        %v758 = vrot.slane %v757, 4
        %v759 = vadd.f32 %v757, %v758
        %v760 = vrot.slane %v759, 2
        %v761 = vadd.f32 %v759, %v760
        %v762 = vrot.slane %v761, 1
        %v763 = vadd.f32 %v761, %v762
        %v764 = vsel %vm497, %v705, 0.0
        %v765 = vsel %vm497, %v706, 0.0
        %v766 = vadd.f32 %v764, %v765
        %v767 = vsel %vm497, %v707, 0.0
        %v768 = vadd.f32 %v766, %v767
        %v769 = vsel %vm497, %v708, 0.0
        %v770 = vadd.f32 %v768, %v769
        %v771 = vrot.slane %v770, 4
        %v772 = vadd.f32 %v770, %v771
        %v773 = vrot.slane %v772, 2
        %v774 = vadd.f32 %v772, %v773
        %v775 = vrot.slane %v774, 1
        %v776 = vadd.f32 %v774, %v775
        %v777 = vsel %vm497, %v709, 0.0
        %v778 = vsel %vm497, %v710, 0.0
        %v779 = vadd.f32 %v777, %v778
        %v780 = vsel %vm497, %v711, 0.0
        %v781 = vadd.f32 %v779, %v780
        %v782 = vsel %vm497, %v712, 0.0
        %v783 = vadd.f32 %v781, %v782
        %v784 = vrot.slane %v783, 4
        %v785 = vadd.f32 %v783, %v784
        %v786 = vrot.slane %v785, 2
        %v787 = vadd.f32 %v785, %v786
        %v788 = vrot.slane %v787, 1
        %v789 = vadd.f32 %v787, %v788
        %v790 = vsel %vm497, %v713, 0.0
        %v791 = vsel %vm497, %v714, 0.0
        %v792 = vadd.f32 %v790, %v791
        %v793 = vsel %vm497, %v715, 0.0
        %v794 = vadd.f32 %v792, %v793
        %v795 = vsel %vm497, %v716, 0.0
        %v796 = vadd.f32 %v794, %v795
        %v797 = vrot.slane %v796, 4
        %v798 = vadd.f32 %v796, %v797
        %v799 = vrot.slane %v798, 2
        %v800 = vadd.f32 %v798, %v799
        %v801 = vrot.slane %v800, 1
        %v802 = vadd.f32 %v800, %v801
        %v803 = vsel %vm497, %v717, 0.0
        %v804 = vsel %vm497, %v718, 0.0
        %v805 = vadd.f32 %v803, %v804
        %v806 = vsel %vm497, %v719, 0.0
        %v807 = vadd.f32 %v805, %v806
        %v808 = vsel %vm497, %v720, 0.0
        %v809 = vadd.f32 %v807, %v808
        %v810 = vrot.slane %v809, 4
        %v811 = vadd.f32 %v809, %v810
        %v812 = vrot.slane %v811, 2
        %v813 = vadd.f32 %v811, %v812
        %v814 = vrot.slane %v813, 1
        %v815 = vadd.f32 %v813, %v814
        %v816 = vsel %vm497, %v721, 0.0
        %v817 = vsel %vm497, %v722, 0.0
        %v818 = vadd.f32 %v816, %v817
        %v819 = vsel %vm497, %v723, 0.0
        %v820 = vadd.f32 %v818, %v819
        %v821 = vsel %vm497, %v724, 0.0
        %v822 = vadd.f32 %v820, %v821
        %v823 = vrot.slane %v822, 4
        %v824 = vadd.f32 %v822, %v823
        %v825 = vrot.slane %v824, 2
        %v826 = vadd.f32 %v824, %v825
        %v827 = vrot.slane %v826, 1
        %v828 = vadd.f32 %v826, %v827
        %s829 = sld [smem:[#allocation7 + $0x1]]
        %v830 = vstv %s829
        %v831 = vadd.f32 %v737, %v830
        %v832 = vadd.f32 %v750, %v830
        %v833 = vadd.f32 %v763, %v830
        %v834 = vadd.f32 %v776, %v830
        %v835 = vadd.f32 %v789, %v830
        %v836 = vadd.f32 %v802, %v830
        %v837 = vadd.f32 %v815, %v830
        %v838 = vadd.f32 %v828, %v830
        %v839 = vmax.f32 %v831, 0.0
        %v840 = vmax.f32 %v832, 0.0
        %v841 = vmax.f32 %v833, 0.0
        %v842 = vmax.f32 %v834, 0.0
        %v843 = vmax.f32 %v835, 0.0
        %v844 = vmax.f32 %v836, 0.0
        %v845 = vmax.f32 %v837, 0.0
        %v846 = vmax.f32 %v838, 0.0
        %s847 = scalar_lea.vmem %s2, 32
        %v848 = vld [vmem:[%s847] sm:$0xff]
        %v849 = vld [vmem:[%s847 + $0x8] sm:$0xff]
        %v850 = vld [vmem:[%s847 + $0x10] sm:$0xff]
        %v851 = vld [vmem:[%s847 + $0x18] sm:$0xff]
        %v852 = vmul.f32 %v848, %v839
        %v853 = vmul.f32 %v849, %v839
        %v854 = vmul.f32 %v850, %v839
        %v855 = vmul.f32 %v851, %v839
        %v856 = vmul.f32 %v848, %v840
        %v857 = vmul.f32 %v849, %v840
        %v858 = vmul.f32 %v850, %v840
        %v859 = vmul.f32 %v851, %v840
        %v860 = vmul.f32 %v848, %v841
        %v861 = vmul.f32 %v849, %v841
        %v862 = vmul.f32 %v850, %v841
        %v863 = vmul.f32 %v851, %v841
        %v864 = vmul.f32 %v848, %v842
        %v865 = vmul.f32 %v849, %v842
        %v866 = vmul.f32 %v850, %v842
        %v867 = vmul.f32 %v851, %v842
        %v868 = vmul.f32 %v848, %v843
        %v869 = vmul.f32 %v849, %v843
        %v870 = vmul.f32 %v850, %v843
        %v871 = vmul.f32 %v851, %v843
        %v872 = vmul.f32 %v848, %v844
        %v873 = vmul.f32 %v849, %v844
        %v874 = vmul.f32 %v850, %v844
        %v875 = vmul.f32 %v851, %v844
        %v876 = vmul.f32 %v848, %v845
        %v877 = vmul.f32 %v849, %v845
        %v878 = vmul.f32 %v850, %v845
        %v879 = vmul.f32 %v851, %v845
        %v880 = vmul.f32 %v848, %v846
        %v881 = vmul.f32 %v849, %v846
        %v882 = vmul.f32 %v850, %v846
        %v883 = vmul.f32 %v851, %v846
        %v884 = vadd.f32 %v656, %v852
        %v885 = vadd.f32 %v657, %v853
        %v886 = vadd.f32 %v658, %v854
        %v887 = vadd.f32 %v659, %v855
        %v888 = vadd.f32 %v660, %v856
        %v889 = vadd.f32 %v661, %v857
        %v890 = vadd.f32 %v662, %v858
        %v891 = vadd.f32 %v663, %v859
        %v892 = vadd.f32 %v664, %v860
        %v893 = vadd.f32 %v665, %v861
        %v894 = vadd.f32 %v666, %v862
        %v895 = vadd.f32 %v667, %v863
        %v896 = vadd.f32 %v668, %v864
        %v897 = vadd.f32 %v669, %v865
        %v898 = vadd.f32 %v670, %v866
        %v899 = vadd.f32 %v671, %v867
        %v900 = vadd.f32 %v672, %v868
        %v901 = vadd.f32 %v673, %v869
        %v902 = vadd.f32 %v674, %v870
        %v903 = vadd.f32 %v675, %v871
        %v904 = vadd.f32 %v676, %v872
        %v905 = vadd.f32 %v677, %v873
        %v906 = vadd.f32 %v678, %v874
        %v907 = vadd.f32 %v679, %v875
        %v908 = vadd.f32 %v680, %v876
        %v909 = vadd.f32 %v681, %v877
        %v910 = vadd.f32 %v682, %v878
        %v911 = vadd.f32 %v683, %v879
        %v912 = vadd.f32 %v684, %v880
        %v913 = vadd.f32 %v685, %v881
        %v914 = vadd.f32 %v686, %v882
        %v915 = vadd.f32 %v687, %v883
        %v916 = vxor.u32 %v884, 2147483648
        %v917 = vxor.u32 %v885, 2147483648
        %v918 = vxor.u32 %v886, 2147483648
        %v919 = vxor.u32 %v887, 2147483648
        %v920 = vxor.u32 %v888, 2147483648
        %v921 = vxor.u32 %v889, 2147483648
        %v922 = vxor.u32 %v890, 2147483648
        %v923 = vxor.u32 %v891, 2147483648
        %v924 = vxor.u32 %v892, 2147483648
        %v925 = vxor.u32 %v893, 2147483648
        %v926 = vxor.u32 %v894, 2147483648
        %v927 = vxor.u32 %v895, 2147483648
        %v928 = vxor.u32 %v896, 2147483648
        %v929 = vxor.u32 %v897, 2147483648
        %v930 = vxor.u32 %v898, 2147483648
        %v931 = vxor.u32 %v899, 2147483648
        %v932 = vxor.u32 %v900, 2147483648
        %v933 = vxor.u32 %v901, 2147483648
        %v934 = vxor.u32 %v902, 2147483648
        %v935 = vxor.u32 %v903, 2147483648
        %v936 = vxor.u32 %v904, 2147483648
        %v937 = vxor.u32 %v905, 2147483648
        %v938 = vxor.u32 %v906, 2147483648
        %v939 = vxor.u32 %v907, 2147483648
        %v940 = vxor.u32 %v908, 2147483648
        %v941 = vxor.u32 %v909, 2147483648
        %v942 = vxor.u32 %v910, 2147483648
        %v943 = vxor.u32 %v911, 2147483648
        %v944 = vxor.u32 %v912, 2147483648
        %v945 = vxor.u32 %v913, 2147483648
        %v946 = vxor.u32 %v914, 2147483648
        %v947 = vxor.u32 %v915, 2147483648
        %v948 = vmul.f32 %v916, 1.442695
        %v949 = vpow.pop %v948
        %v950 = vmul.f32 %v917, 1.442695
        %v951 = vpow.pop %v950
        %v952 = vmul.f32 %v918, 1.442695
        %v953 = vpow.pop %v952
        %v954 = vmul.f32 %v919, 1.442695
        %v955 = vpow.pop %v954
        %v956 = vmul.f32 %v920, 1.442695
        %v957 = vpow.pop %v956
        %v958 = vmul.f32 %v921, 1.442695
        %v959 = vpow.pop %v958
        %v960 = vmul.f32 %v922, 1.442695
        %v961 = vpow.pop %v960
        %v962 = vmul.f32 %v923, 1.442695
        %v963 = vpow.pop %v962
        %v964 = vmul.f32 %v924, 1.442695
        %v965 = vpow.pop %v964
        %v966 = vmul.f32 %v925, 1.442695
        %v967 = vpow.pop %v966
        %v968 = vmul.f32 %v926, 1.442695
        %v969 = vpow.pop %v968
        %v970 = vmul.f32 %v927, 1.442695
        %v971 = vpow.pop %v970
        %v972 = vmul.f32 %v928, 1.442695
        %v973 = vpow.pop %v972
        %v974 = vmul.f32 %v929, 1.442695
        %v975 = vpow.pop %v974
        %v976 = vmul.f32 %v930, 1.442695
        %v977 = vpow.pop %v976
        %v978 = vmul.f32 %v931, 1.442695
        %v979 = vpow.pop %v978
        %v980 = vmul.f32 %v932, 1.442695
        %v981 = vpow.pop %v980
        %v982 = vmul.f32 %v933, 1.442695
        %v983 = vpow.pop %v982
        %v984 = vmul.f32 %v934, 1.442695
        %v985 = vpow.pop %v984
        %v986 = vmul.f32 %v935, 1.442695
        %v987 = vpow.pop %v986
        %v988 = vmul.f32 %v936, 1.442695
        %v989 = vpow.pop %v988
        %v990 = vmul.f32 %v937, 1.442695
        %v991 = vpow.pop %v990
        %v992 = vmul.f32 %v938, 1.442695
        %v993 = vpow.pop %v992
        %v994 = vmul.f32 %v939, 1.442695
        %v995 = vpow.pop %v994
        %v996 = vmul.f32 %v940, 1.442695
        %v997 = vpow.pop %v996
        %v998 = vmul.f32 %v941, 1.442695
        %v999 = vpow.pop %v998
        %v1000 = vmul.f32 %v942, 1.442695
        %v1001 = vpow.pop %v1000
        %v1002 = vmul.f32 %v943, 1.442695
        %v1003 = vpow.pop %v1002
        %v1004 = vmul.f32 %v944, 1.442695
        %v1005 = vpow.pop %v1004
        %v1006 = vmul.f32 %v945, 1.442695
        %v1007 = vpow.pop %v1006
        %v1008 = vmul.f32 %v946, 1.442695
        %v1009 = vpow.pop %v1008
        %v1010 = vmul.f32 %v947, 1.442695
        %v1011 = vpow.pop %v1010
        %v1012 = vadd.f32 %v949, 1.0
        %v1013 = vadd.f32 %v951, 1.0
        %v1014 = vadd.f32 %v953, 1.0
        %v1015 = vadd.f32 %v955, 1.0
        %v1016 = vadd.f32 %v957, 1.0
        %v1017 = vadd.f32 %v959, 1.0
        %v1018 = vadd.f32 %v961, 1.0
        %v1019 = vadd.f32 %v963, 1.0
        %v1020 = vadd.f32 %v965, 1.0
        %v1021 = vadd.f32 %v967, 1.0
        %v1022 = vadd.f32 %v969, 1.0
        %v1023 = vadd.f32 %v971, 1.0
        %v1024 = vadd.f32 %v973, 1.0
        %v1025 = vadd.f32 %v975, 1.0
        %v1026 = vadd.f32 %v977, 1.0
        %v1027 = vadd.f32 %v979, 1.0
        %v1028 = vadd.f32 %v981, 1.0
        %v1029 = vadd.f32 %v983, 1.0
        %v1030 = vadd.f32 %v985, 1.0
        %v1031 = vadd.f32 %v987, 1.0
        %v1032 = vadd.f32 %v989, 1.0
        %v1033 = vadd.f32 %v991, 1.0
        %v1034 = vadd.f32 %v993, 1.0
        %v1035 = vadd.f32 %v995, 1.0
        %v1036 = vadd.f32 %v997, 1.0
        %v1037 = vadd.f32 %v999, 1.0
        %v1038 = vadd.f32 %v1001, 1.0
        %v1039 = vadd.f32 %v1003, 1.0
        %v1040 = vadd.f32 %v1005, 1.0
        %v1041 = vadd.f32 %v1007, 1.0
        %v1042 = vadd.f32 %v1009, 1.0
        %v1043 = vadd.f32 %v1011, 1.0
        %v1044 = vrcp.pop %v1012
        %v1045 = vmul.f32 1.0, %v1044
        %v1046 = vrcp.pop %v1013
        %v1047 = vmul.f32 1.0, %v1046
        %v1048 = vrcp.pop %v1014
        %v1049 = vmul.f32 1.0, %v1048
        %v1050 = vrcp.pop %v1015
        %v1051 = vmul.f32 1.0, %v1050
        %v1052 = vrcp.pop %v1016
        %v1053 = vmul.f32 1.0, %v1052
        %v1054 = vrcp.pop %v1017
        %v1055 = vmul.f32 1.0, %v1054
        %v1056 = vrcp.pop %v1018
        %v1057 = vmul.f32 1.0, %v1056
        %v1058 = vrcp.pop %v1019
        %v1059 = vmul.f32 1.0, %v1058
        %v1060 = vrcp.pop %v1020
        %v1061 = vmul.f32 1.0, %v1060
        %v1062 = vrcp.pop %v1021
        %v1063 = vmul.f32 1.0, %v1062
        %v1064 = vrcp.pop %v1022
        %v1065 = vmul.f32 1.0, %v1064
        %v1066 = vrcp.pop %v1023
        %v1067 = vmul.f32 1.0, %v1066
        %v1068 = vrcp.pop %v1024
        %v1069 = vmul.f32 1.0, %v1068
        %v1070 = vrcp.pop %v1025
        %v1071 = vmul.f32 1.0, %v1070
        %v1072 = vrcp.pop %v1026
        %v1073 = vmul.f32 1.0, %v1072
        %v1074 = vrcp.pop %v1027
        %v1075 = vmul.f32 1.0, %v1074
        %v1076 = vrcp.pop %v1028
        %v1077 = vmul.f32 1.0, %v1076
        %v1078 = vrcp.pop %v1029
        %v1079 = vmul.f32 1.0, %v1078
        %v1080 = vrcp.pop %v1030
        %v1081 = vmul.f32 1.0, %v1080
        %v1082 = vrcp.pop %v1031
        %v1083 = vmul.f32 1.0, %v1082
        %v1084 = vrcp.pop %v1032
        %v1085 = vmul.f32 1.0, %v1084
        %v1086 = vrcp.pop %v1033
        %v1087 = vmul.f32 1.0, %v1086
        %v1088 = vrcp.pop %v1034
        %v1089 = vmul.f32 1.0, %v1088
        %v1090 = vrcp.pop %v1035
        %v1091 = vmul.f32 1.0, %v1090
        %v1092 = vrcp.pop %v1036
        %v1093 = vmul.f32 1.0, %v1092
        %v1094 = vrcp.pop %v1037
        %v1095 = vmul.f32 1.0, %v1094
        %v1096 = vrcp.pop %v1038
        %v1097 = vmul.f32 1.0, %v1096
        %v1098 = vrcp.pop %v1039
        %v1099 = vmul.f32 1.0, %v1098
        %v1100 = vrcp.pop %v1040
        %v1101 = vmul.f32 1.0, %v1100
        %v1102 = vrcp.pop %v1041
        %v1103 = vmul.f32 1.0, %v1102
        %v1104 = vrcp.pop %v1042
        %v1105 = vmul.f32 1.0, %v1104
        %v1106 = vrcp.pop %v1043
        %v1107 = vmul.f32 1.0, %v1106
        %1109 = vset.pattern.permute.xlu0 0
        %1110 = vperm.xlu0 %1109, %v1045
        %v1111 = vpop.permute.xlu0 %1110
        %1114 = vset.pattern.permute.xlu0 0
        %1115 = vperm.xlu0 %1114, %v1047
        %v1116 = vpop.permute.xlu0 %1115
        %1119 = vset.pattern.permute.xlu0 0
        %1120 = vperm.xlu0 %1119, %v1049
        %v1121 = vpop.permute.xlu0 %1120
        %1124 = vset.pattern.permute.xlu0 0
        %1125 = vperm.xlu0 %1124, %v1051
        %v1126 = vpop.permute.xlu0 %1125
        %1129 = vset.pattern.permute.xlu0 0
        %1130 = vperm.xlu0 %1129, %v1053
        %v1131 = vpop.permute.xlu0 %1130
        %1134 = vset.pattern.permute.xlu0 0
        %1135 = vperm.xlu0 %1134, %v1055
        %v1136 = vpop.permute.xlu0 %1135
        %1139 = vset.pattern.permute.xlu0 0
        %1140 = vperm.xlu0 %1139, %v1057
        %v1141 = vpop.permute.xlu0 %1140
        %1144 = vset.pattern.permute.xlu0 0
        %1145 = vperm.xlu0 %1144, %v1059
        %v1146 = vpop.permute.xlu0 %1145
        %1149 = vset.pattern.permute.xlu0 0
        %1150 = vperm.xlu0 %1149, %v1061
        %v1151 = vpop.permute.xlu0 %1150
        %1154 = vset.pattern.permute.xlu0 0
        %1155 = vperm.xlu0 %1154, %v1063
        %v1156 = vpop.permute.xlu0 %1155
        %1159 = vset.pattern.permute.xlu0 0
        %1160 = vperm.xlu0 %1159, %v1065
        %v1161 = vpop.permute.xlu0 %1160
        %1164 = vset.pattern.permute.xlu0 0
        %1165 = vperm.xlu0 %1164, %v1067
        %v1166 = vpop.permute.xlu0 %1165
        %1169 = vset.pattern.permute.xlu0 0
        %1170 = vperm.xlu0 %1169, %v1069
        %v1171 = vpop.permute.xlu0 %1170
        %1174 = vset.pattern.permute.xlu0 0
        %1175 = vperm.xlu0 %1174, %v1071
        %v1176 = vpop.permute.xlu0 %1175
        %1179 = vset.pattern.permute.xlu0 0
        %1180 = vperm.xlu0 %1179, %v1073
        %v1181 = vpop.permute.xlu0 %1180
        %1184 = vset.pattern.permute.xlu0 0
        %1185 = vperm.xlu0 %1184, %v1075
        %v1186 = vpop.permute.xlu0 %1185
        %1189 = vset.pattern.permute.xlu0 0
        %1190 = vperm.xlu0 %1189, %v1077
        %v1191 = vpop.permute.xlu0 %1190
        %1194 = vset.pattern.permute.xlu0 0
        %1195 = vperm.xlu0 %1194, %v1079
        %v1196 = vpop.permute.xlu0 %1195
        %1199 = vset.pattern.permute.xlu0 0
        %1200 = vperm.xlu0 %1199, %v1081
        %v1201 = vpop.permute.xlu0 %1200
        %1204 = vset.pattern.permute.xlu0 0
        %1205 = vperm.xlu0 %1204, %v1083
        %v1206 = vpop.permute.xlu0 %1205
        %1209 = vset.pattern.permute.xlu0 0
        %1210 = vperm.xlu0 %1209, %v1085
        %v1211 = vpop.permute.xlu0 %1210
        %1214 = vset.pattern.permute.xlu0 0
        %1215 = vperm.xlu0 %1214, %v1087
        %v1216 = vpop.permute.xlu0 %1215
        %1219 = vset.pattern.permute.xlu0 0
        %1220 = vperm.xlu0 %1219, %v1089
        %v1221 = vpop.permute.xlu0 %1220
        %1224 = vset.pattern.permute.xlu0 0
        %1225 = vperm.xlu0 %1224, %v1091
        %v1226 = vpop.permute.xlu0 %1225
        %1229 = vset.pattern.permute.xlu0 0
        %1230 = vperm.xlu0 %1229, %v1093
        %v1231 = vpop.permute.xlu0 %1230
        %1234 = vset.pattern.permute.xlu0 0
        %1235 = vperm.xlu0 %1234, %v1095
        %v1236 = vpop.permute.xlu0 %1235
        %1239 = vset.pattern.permute.xlu0 0
        %1240 = vperm.xlu0 %1239, %v1097
        %v1241 = vpop.permute.xlu0 %1240
        %1244 = vset.pattern.permute.xlu0 0
        %1245 = vperm.xlu0 %1244, %v1099
        %v1246 = vpop.permute.xlu0 %1245
        %1249 = vset.pattern.permute.xlu0 0
        %1250 = vperm.xlu0 %1249, %v1101
        %v1251 = vpop.permute.xlu0 %1250
        %1254 = vset.pattern.permute.xlu0 0
        %1255 = vperm.xlu0 %1254, %v1103
        %v1256 = vpop.permute.xlu0 %1255
        %1259 = vset.pattern.permute.xlu0 0
        %1260 = vperm.xlu0 %1259, %v1105
        %v1261 = vpop.permute.xlu0 %1260
        %1264 = vset.pattern.permute.xlu0 0
        %1265 = vperm.xlu0 %1264, %v1107
        %v1266 = vpop.permute.xlu0 %1265
        %v1268 = vmul.f32 %v328, %v1111
        %v1269 = vmul.f32 %v329, %v1116
        %v1270 = vmul.f32 %v330, %v1121
        %v1271 = vmul.f32 %v331, %v1126
        %v1272 = vmul.f32 %v332, %v1131
        %v1273 = vmul.f32 %v333, %v1136
        %v1274 = vmul.f32 %v334, %v1141
        %v1275 = vmul.f32 %v335, %v1146
        %v1276 = vmul.f32 %v336, %v1151
        %v1277 = vmul.f32 %v337, %v1156
        %v1278 = vmul.f32 %v338, %v1161
        %v1279 = vmul.f32 %v339, %v1166
        %v1280 = vmul.f32 %v340, %v1171
        %v1281 = vmul.f32 %v341, %v1176
        %v1282 = vmul.f32 %v342, %v1181
        %v1283 = vmul.f32 %v343, %v1186
        %v1284 = vmul.f32 %v344, %v1191
        %v1285 = vmul.f32 %v345, %v1196
        %v1286 = vmul.f32 %v346, %v1201
        %v1287 = vmul.f32 %v347, %v1206
        %v1288 = vmul.f32 %v348, %v1211
        %v1289 = vmul.f32 %v349, %v1216
        %v1290 = vmul.f32 %v350, %v1221
        %v1291 = vmul.f32 %v351, %v1226
        %v1292 = vmul.f32 %v352, %v1231
        %v1293 = vmul.f32 %v353, %v1236
        %v1294 = vmul.f32 %v354, %v1241
        %v1295 = vmul.f32 %v355, %v1246
        %v1296 = vmul.f32 %v356, %v1251
        %v1297 = vmul.f32 %v357, %v1256
        %v1298 = vmul.f32 %v358, %v1261
        %v1299 = vmul.f32 %v359, %v1266
        %v1300 = vmax.f32 %v1268, %v1269
        %v1301 = vmax.f32 %v1300, %v1270
        %v1302 = vmax.f32 %v1301, %v1271
        %v1303 = vrot.slane %v1302, 4
        %v1304 = vmax.f32 %v1302, %v1303
        %v1305 = vrot.slane %v1304, 2
        %v1306 = vmax.f32 %v1304, %v1305
        %v1307 = vrot.slane %v1306, 1
        %v1308 = vmax.f32 %v1306, %v1307
        %v1309 = vmax.f32 %v1272, %v1273
        %v1310 = vmax.f32 %v1309, %v1274
        %v1311 = vmax.f32 %v1310, %v1275
        %v1312 = vrot.slane %v1311, 4
        %v1313 = vmax.f32 %v1311, %v1312
        %v1314 = vrot.slane %v1313, 2
        %v1315 = vmax.f32 %v1313, %v1314
        %v1316 = vrot.slane %v1315, 1
        %v1317 = vmax.f32 %v1315, %v1316
        %v1318 = vmax.f32 %v1276, %v1277
        %v1319 = vmax.f32 %v1318, %v1278
        %v1320 = vmax.f32 %v1319, %v1279
        %v1321 = vrot.slane %v1320, 4
        %v1322 = vmax.f32 %v1320, %v1321
        %v1323 = vrot.slane %v1322, 2
        %v1324 = vmax.f32 %v1322, %v1323
        %v1325 = vrot.slane %v1324, 1
        %v1326 = vmax.f32 %v1324, %v1325
        %v1327 = vmax.f32 %v1280, %v1281
        %v1328 = vmax.f32 %v1327, %v1282
        %v1329 = vmax.f32 %v1328, %v1283
        %v1330 = vrot.slane %v1329, 4
        %v1331 = vmax.f32 %v1329, %v1330
        %v1332 = vrot.slane %v1331, 2
        %v1333 = vmax.f32 %v1331, %v1332
        %v1334 = vrot.slane %v1333, 1
        %v1335 = vmax.f32 %v1333, %v1334
        %v1336 = vmax.f32 %v1284, %v1285
        %v1337 = vmax.f32 %v1336, %v1286
        %v1338 = vmax.f32 %v1337, %v1287
        %v1339 = vrot.slane %v1338, 4
        %v1340 = vmax.f32 %v1338, %v1339
        %v1341 = vrot.slane %v1340, 2
        %v1342 = vmax.f32 %v1340, %v1341
        %v1343 = vrot.slane %v1342, 1
        %v1344 = vmax.f32 %v1342, %v1343
        %v1345 = vmax.f32 %v1288, %v1289
        %v1346 = vmax.f32 %v1345, %v1290
        %v1347 = vmax.f32 %v1346, %v1291
        %v1348 = vrot.slane %v1347, 4
        %v1349 = vmax.f32 %v1347, %v1348
        %v1350 = vrot.slane %v1349, 2
        %v1351 = vmax.f32 %v1349, %v1350
        %v1352 = vrot.slane %v1351, 1
        %v1353 = vmax.f32 %v1351, %v1352
        %v1354 = vmax.f32 %v1292, %v1293
        %v1355 = vmax.f32 %v1354, %v1294
        %v1356 = vmax.f32 %v1355, %v1295
        %v1357 = vrot.slane %v1356, 4
        %v1358 = vmax.f32 %v1356, %v1357
        %v1359 = vrot.slane %v1358, 2
        %v1360 = vmax.f32 %v1358, %v1359
        %v1361 = vrot.slane %v1360, 1
        %v1362 = vmax.f32 %v1360, %v1361
        %v1363 = vmax.f32 %v1296, %v1297
        %v1364 = vmax.f32 %v1363, %v1298
        %v1365 = vmax.f32 %v1364, %v1299
        %v1366 = vrot.slane %v1365, 4
        %v1367 = vmax.f32 %v1365, %v1366
        %v1368 = vrot.slane %v1367, 2
        %v1369 = vmax.f32 %v1367, %v1368
        %v1370 = vrot.slane %v1369, 1
        %v1371 = vmax.f32 %v1369, %v1370
        %v1372 = vadd.f32 %v1268, %v1269
        %v1373 = vadd.f32 %v1372, %v1270
        %v1374 = vadd.f32 %v1373, %v1271
        %v1375 = vrot.slane %v1374, 4
        %v1376 = vadd.f32 %v1374, %v1375
        %v1377 = vrot.slane %v1376, 2
        %v1378 = vadd.f32 %v1376, %v1377
        %v1379 = vrot.slane %v1378, 1
        %v1380 = vadd.f32 %v1378, %v1379
        %v1381 = vadd.f32 %v1272, %v1273
        %v1382 = vadd.f32 %v1381, %v1274
        %v1383 = vadd.f32 %v1382, %v1275
        %v1384 = vrot.slane %v1383, 4
        %v1385 = vadd.f32 %v1383, %v1384
        %v1386 = vrot.slane %v1385, 2
        %v1387 = vadd.f32 %v1385, %v1386
        %v1388 = vrot.slane %v1387, 1
        %v1389 = vadd.f32 %v1387, %v1388
        %v1390 = vadd.f32 %v1276, %v1277
        %v1391 = vadd.f32 %v1390, %v1278
        %v1392 = vadd.f32 %v1391, %v1279
        %v1393 = vrot.slane %v1392, 4
        %v1394 = vadd.f32 %v1392, %v1393
        %v1395 = vrot.slane %v1394, 2
        %v1396 = vadd.f32 %v1394, %v1395
        %v1397 = vrot.slane %v1396, 1
        %v1398 = vadd.f32 %v1396, %v1397
        %v1399 = vadd.f32 %v1280, %v1281
        %v1400 = vadd.f32 %v1399, %v1282
        %v1401 = vadd.f32 %v1400, %v1283
        %v1402 = vrot.slane %v1401, 4
        %v1403 = vadd.f32 %v1401, %v1402
        %v1404 = vrot.slane %v1403, 2
        %v1405 = vadd.f32 %v1403, %v1404
        %v1406 = vrot.slane %v1405, 1
        %v1407 = vadd.f32 %v1405, %v1406
        %v1408 = vadd.f32 %v1284, %v1285
        %v1409 = vadd.f32 %v1408, %v1286
        %v1410 = vadd.f32 %v1409, %v1287
        %v1411 = vrot.slane %v1410, 4
        %v1412 = vadd.f32 %v1410, %v1411
        %v1413 = vrot.slane %v1412, 2
        %v1414 = vadd.f32 %v1412, %v1413
        %v1415 = vrot.slane %v1414, 1
        %v1416 = vadd.f32 %v1414, %v1415
        %v1417 = vadd.f32 %v1288, %v1289
        %v1418 = vadd.f32 %v1417, %v1290
        %v1419 = vadd.f32 %v1418, %v1291
        %v1420 = vrot.slane %v1419, 4
        %v1421 = vadd.f32 %v1419, %v1420
        %v1422 = vrot.slane %v1421, 2
        %v1423 = vadd.f32 %v1421, %v1422
        %v1424 = vrot.slane %v1423, 1
        %v1425 = vadd.f32 %v1423, %v1424
        %v1426 = vadd.f32 %v1292, %v1293
        %v1427 = vadd.f32 %v1426, %v1294
        %v1428 = vadd.f32 %v1427, %v1295
        %v1429 = vrot.slane %v1428, 4
        %v1430 = vadd.f32 %v1428, %v1429
        %v1431 = vrot.slane %v1430, 2
        %v1432 = vadd.f32 %v1430, %v1431
        %v1433 = vrot.slane %v1432, 1
        %v1434 = vadd.f32 %v1432, %v1433
        %v1435 = vadd.f32 %v1296, %v1297
        %v1436 = vadd.f32 %v1435, %v1298
        %v1437 = vadd.f32 %v1436, %v1299
        %v1438 = vrot.slane %v1437, 4
        %v1439 = vadd.f32 %v1437, %v1438
        %v1440 = vrot.slane %v1439, 2
        %v1441 = vadd.f32 %v1439, %v1440
        %v1442 = vrot.slane %v1441, 1
        %v1443 = vadd.f32 %v1441, %v1442
        %v1444 = vrcp.pop 32.0
        %v1445 = vmul.f32 %v1380, %v1444
        %v1446 = vmul.f32 %v1389, %v1444
        %v1447 = vmul.f32 %v1398, %v1444
        %v1448 = vmul.f32 %v1407, %v1444
        %v1449 = vmul.f32 %v1416, %v1444
        %v1450 = vmul.f32 %v1425, %v1444
        %v1451 = vmul.f32 %v1434, %v1444
        %v1452 = vmul.f32 %v1443, %v1444
        %vm1453 = vcmask 1040384
        %v1454 = vsel %vm1453, %v1308, %v1445
        %v1455 = vsel %vm1453, %v1317, %v1446
        %v1456 = vsel %vm1453, %v1326, %v1447
        %v1457 = vsel %vm1453, %v1335, %v1448
        %v1458 = vsel %vm1453, %v1344, %v1449
        %v1459 = vsel %vm1453, %v1353, %v1450
        %v1460 = vsel %vm1453, %v1362, %v1451
        %v1461 = vsel %vm1453, %v1371, %v1452
        %v1462 = vlaneseq
        %v1463 = vand.u32 %v1462, 127
        %v1464 = vadd.s32 %v1463, 4294967293
        %vm1465 = vcmp.ge.s32.totalorder %v1464, 0
        %vm1466 = vcmp.lt.s32.totalorder %v1464, 128
        %vm1467 = vmand %vm1465, %vm1466
        %v1468 = vsel %vm1467, 1, 0
        %v1469 = vcvt.s32.f32 %v1468
        %s1470 = sld [smem:[#allocation8]]
        %v1471 = vstv %s1470
        %v1472 = vmul.f32 %v1471, %v1469
        %s1473 = sld [smem:[#allocation8 + $0x7]]
        %v1474 = vstv %s1473
        %v1475 = vmul.f32 %v1474, %v1469
        %v1476 = vsel %vm1453, %v1472, %v1475
        %v1477 = vadd.s32 %v1463, 4294967294
        %vm1478 = vcmp.ge.s32.totalorder %v1477, 0
        %vm1479 = vcmp.lt.s32.totalorder %v1477, 128
        %vm1480 = vmand %vm1478, %vm1479
        %v1481 = vsel %vm1480, 1, 0
        %v1482 = vcvt.s32.f32 %v1481
        %s1483 = sld [smem:[#allocation8 + $0x1]]
        %v1484 = vstv %s1483
        %v1485 = vmul.f32 %v1484, %v1482
        %s1486 = sld [smem:[#allocation8 + $0x8]]
        %v1487 = vstv %s1486
        %v1488 = vmul.f32 %v1487, %v1482
        %v1489 = vsel %vm1453, %v1485, %v1488
        %v1490 = vadd.s32 %v1463, 4294967295
        %vm1491 = vcmp.ge.s32.totalorder %v1490, 0
        %vm1492 = vcmp.lt.s32.totalorder %v1490, 128
        %vm1493 = vmand %vm1491, %vm1492
        %v1494 = vsel %vm1493, 1, 0
        %v1495 = vcvt.s32.f32 %v1494
        %s1496 = sld [smem:[#allocation8 + $0x2]]
        %v1497 = vstv %s1496
        %v1498 = vmul.f32 %v1497, %v1495
        %s1499 = sld [smem:[#allocation8 + $0x9]]
        %v1500 = vstv %s1499
        %v1501 = vmul.f32 %v1500, %v1495
        %v1502 = vsel %vm1453, %v1498, %v1501
        %vm1503 = vcmp.ge.s32.totalorder %v1463, 0
        %vm1504 = vcmp.lt.s32.totalorder %v1463, 128
        %vm1505 = vmand %vm1503, %vm1504
        %v1506 = vsel %vm1505, 1, 0
        %v1507 = vcvt.s32.f32 %v1506
        %s1508 = sld [smem:[#allocation8 + $0x3]]
        %v1509 = vstv %s1508
        %v1510 = vmul.f32 %v1509, %v1507
        %s1511 = sld [smem:[#allocation8 + $0xa]]
        %v1512 = vstv %s1511
        %v1513 = vmul.f32 %v1512, %v1507
        %v1514 = vsel %vm1453, %v1510, %v1513
        %v1515 = vadd.s32 %v1463, 1
        %vm1516 = vcmp.ge.s32.totalorder %v1515, 0
        %vm1517 = vcmp.lt.s32.totalorder %v1515, 128
        %vm1518 = vmand %vm1516, %vm1517
        %v1519 = vsel %vm1518, 1, 0
        %v1520 = vcvt.s32.f32 %v1519
        %s1521 = sld [smem:[#allocation8 + $0x4]]
        %v1522 = vstv %s1521
        %v1523 = vmul.f32 %v1522, %v1520
        %s1524 = sld [smem:[#allocation8 + $0xb]]
        %v1525 = vstv %s1524
        %v1526 = vmul.f32 %v1525, %v1520
        %v1527 = vsel %vm1453, %v1523, %v1526
        %v1528 = vadd.s32 %v1463, 2
        %vm1529 = vcmp.ge.s32.totalorder %v1528, 0
        %vm1530 = vcmp.lt.s32.totalorder %v1528, 128
        %vm1531 = vmand %vm1529, %vm1530
        %v1532 = vsel %vm1531, 1, 0
        %v1533 = vcvt.s32.f32 %v1532
        %s1534 = sld [smem:[#allocation8 + $0x5]]
        %v1535 = vstv %s1534
        %v1536 = vmul.f32 %v1535, %v1533
        %s1537 = sld [smem:[#allocation8 + $0xc]]
        %v1538 = vstv %s1537
        %v1539 = vmul.f32 %v1538, %v1533
        %v1540 = vsel %vm1453, %v1536, %v1539
        %v1541 = vadd.s32 %v1463, 3
        %vm1542 = vcmp.ge.s32.totalorder %v1541, 0
        %vm1543 = vcmp.lt.s32.totalorder %v1541, 128
        %vm1544 = vmand %vm1542, %vm1543
        %v1545 = vsel %vm1544, 1, 0
        %v1546 = vcvt.s32.f32 %v1545
        %s1547 = sld [smem:[#allocation8 + $0x6]]
        %v1548 = vstv %s1547
        %v1549 = vmul.f32 %v1548, %v1546
        %s1550 = sld [smem:[#allocation8 + $0xd]]
        %v1551 = vstv %s1550
        %v1552 = vmul.f32 %v1551, %v1546
        %v1553 = vsel %vm1453, %v1549, %v1552
        %v1554 = vmul.f32 %v1514, %v1454
        %v1555 = vmul.f32 %v1514, %v1455
        %v1556 = vmul.f32 %v1514, %v1456
        %v1557 = vmul.f32 %v1514, %v1457
        %v1558 = vmul.f32 %v1514, %v1458
        %v1559 = vmul.f32 %v1514, %v1459
        %v1560 = vmul.f32 %v1514, %v1460
        %v1561 = vmul.f32 %v1514, %v1461
        %1562 = vrot.lane.b32.xlu0 %v1454, 3
        %v1563 = vpop.permute.xlu0 %1562
        %1564 = vrot.lane.b32.xlu0 %v1455, 3
        %v1565 = vpop.permute.xlu0 %1564
        %1566 = vrot.lane.b32.xlu0 %v1456, 3
        %v1567 = vpop.permute.xlu0 %1566
        %1568 = vrot.lane.b32.xlu0 %v1457, 3
        %v1569 = vpop.permute.xlu0 %1568
        %1570 = vrot.lane.b32.xlu0 %v1458, 3
        %v1571 = vpop.permute.xlu0 %1570
        %1572 = vrot.lane.b32.xlu0 %v1459, 3
        %v1573 = vpop.permute.xlu0 %1572
        %1574 = vrot.lane.b32.xlu0 %v1460, 3
        %v1575 = vpop.permute.xlu0 %1574
        %1576 = vrot.lane.b32.xlu0 %v1461, 3
        %v1577 = vpop.permute.xlu0 %1576
        %v1578 = vmul.f32 %v1476, %v1563
        %v1579 = vmul.f32 %v1476, %v1565
        %v1580 = vmul.f32 %v1476, %v1567
        %v1581 = vmul.f32 %v1476, %v1569
        %v1582 = vmul.f32 %v1476, %v1571
        %v1583 = vmul.f32 %v1476, %v1573
        %v1584 = vmul.f32 %v1476, %v1575
        %v1585 = vmul.f32 %v1476, %v1577
        %v1586 = vadd.f32 %v1554, %v1578
        %v1587 = vadd.f32 %v1555, %v1579
        %v1588 = vadd.f32 %v1556, %v1580
        %v1589 = vadd.f32 %v1557, %v1581
        %v1590 = vadd.f32 %v1558, %v1582
        %v1591 = vadd.f32 %v1559, %v1583
        %v1592 = vadd.f32 %v1560, %v1584
        %v1593 = vadd.f32 %v1561, %v1585
        %1594 = vrot.lane.b32.xlu0 %v1454, 2
        %v1595 = vpop.permute.xlu0 %1594
        %1596 = vrot.lane.b32.xlu0 %v1455, 2
        %v1597 = vpop.permute.xlu0 %1596
        %1598 = vrot.lane.b32.xlu0 %v1456, 2
        %v1599 = vpop.permute.xlu0 %1598
        %1600 = vrot.lane.b32.xlu0 %v1457, 2
        %v1601 = vpop.permute.xlu0 %1600
        %1602 = vrot.lane.b32.xlu0 %v1458, 2
        %v1603 = vpop.permute.xlu0 %1602
        %1604 = vrot.lane.b32.xlu0 %v1459, 2
        %v1605 = vpop.permute.xlu0 %1604
        %1606 = vrot.lane.b32.xlu0 %v1460, 2
        %v1607 = vpop.permute.xlu0 %1606
        %1608 = vrot.lane.b32.xlu0 %v1461, 2
        %v1609 = vpop.permute.xlu0 %1608
        %v1610 = vmul.f32 %v1489, %v1595
        %v1611 = vmul.f32 %v1489, %v1597
        %v1612 = vmul.f32 %v1489, %v1599
        %v1613 = vmul.f32 %v1489, %v1601
        %v1614 = vmul.f32 %v1489, %v1603
        %v1615 = vmul.f32 %v1489, %v1605
        %v1616 = vmul.f32 %v1489, %v1607
        %v1617 = vmul.f32 %v1489, %v1609
        %v1618 = vadd.f32 %v1586, %v1610
        %v1619 = vadd.f32 %v1587, %v1611
        %v1620 = vadd.f32 %v1588, %v1612
        %v1621 = vadd.f32 %v1589, %v1613
        %v1622 = vadd.f32 %v1590, %v1614
        %v1623 = vadd.f32 %v1591, %v1615
        %v1624 = vadd.f32 %v1592, %v1616
        %v1625 = vadd.f32 %v1593, %v1617
        %1626 = vrot.lane.b32.xlu0 %v1454, 1
        %v1627 = vpop.permute.xlu0 %1626
        %1628 = vrot.lane.b32.xlu0 %v1455, 1
        %v1629 = vpop.permute.xlu0 %1628
        %1630 = vrot.lane.b32.xlu0 %v1456, 1
        %v1631 = vpop.permute.xlu0 %1630
        %1632 = vrot.lane.b32.xlu0 %v1457, 1
        %v1633 = vpop.permute.xlu0 %1632
        %1634 = vrot.lane.b32.xlu0 %v1458, 1
        %v1635 = vpop.permute.xlu0 %1634
        %1636 = vrot.lane.b32.xlu0 %v1459, 1
        %v1637 = vpop.permute.xlu0 %1636
        %1638 = vrot.lane.b32.xlu0 %v1460, 1
        %v1639 = vpop.permute.xlu0 %1638
        %1640 = vrot.lane.b32.xlu0 %v1461, 1
        %v1641 = vpop.permute.xlu0 %1640
        %v1642 = vmul.f32 %v1502, %v1627
        %v1643 = vmul.f32 %v1502, %v1629
        %v1644 = vmul.f32 %v1502, %v1631
        %v1645 = vmul.f32 %v1502, %v1633
        %v1646 = vmul.f32 %v1502, %v1635
        %v1647 = vmul.f32 %v1502, %v1637
        %v1648 = vmul.f32 %v1502, %v1639
        %v1649 = vmul.f32 %v1502, %v1641
        %v1650 = vadd.f32 %v1618, %v1642
        %v1651 = vadd.f32 %v1619, %v1643
        %v1652 = vadd.f32 %v1620, %v1644
        %v1653 = vadd.f32 %v1621, %v1645
        %v1654 = vadd.f32 %v1622, %v1646
        %v1655 = vadd.f32 %v1623, %v1647
        %v1656 = vadd.f32 %v1624, %v1648
        %v1657 = vadd.f32 %v1625, %v1649
        %1658 = vrot.lane.b32.xlu0 %v1454, 127
        %v1659 = vpop.permute.xlu0 %1658
        %1660 = vrot.lane.b32.xlu0 %v1455, 127
        %v1661 = vpop.permute.xlu0 %1660
        %1662 = vrot.lane.b32.xlu0 %v1456, 127
        %v1663 = vpop.permute.xlu0 %1662
        %1664 = vrot.lane.b32.xlu0 %v1457, 127
        %v1665 = vpop.permute.xlu0 %1664
        %1666 = vrot.lane.b32.xlu0 %v1458, 127
        %v1667 = vpop.permute.xlu0 %1666
        %1668 = vrot.lane.b32.xlu0 %v1459, 127
        %v1669 = vpop.permute.xlu0 %1668
        %1670 = vrot.lane.b32.xlu0 %v1460, 127
        %v1671 = vpop.permute.xlu0 %1670
        %1672 = vrot.lane.b32.xlu0 %v1461, 127
        %v1673 = vpop.permute.xlu0 %1672
        %v1674 = vmul.f32 %v1527, %v1659
        %v1675 = vmul.f32 %v1527, %v1661
        %v1676 = vmul.f32 %v1527, %v1663
        %v1677 = vmul.f32 %v1527, %v1665
        %v1678 = vmul.f32 %v1527, %v1667
        %v1679 = vmul.f32 %v1527, %v1669
        %v1680 = vmul.f32 %v1527, %v1671
        %v1681 = vmul.f32 %v1527, %v1673
        %v1682 = vadd.f32 %v1650, %v1674
        %v1683 = vadd.f32 %v1651, %v1675
        %v1684 = vadd.f32 %v1652, %v1676
        %v1685 = vadd.f32 %v1653, %v1677
        %v1686 = vadd.f32 %v1654, %v1678
        %v1687 = vadd.f32 %v1655, %v1679
        %v1688 = vadd.f32 %v1656, %v1680
        %v1689 = vadd.f32 %v1657, %v1681
        %1690 = vrot.lane.b32.xlu0 %v1454, 126
        %v1691 = vpop.permute.xlu0 %1690
        %1692 = vrot.lane.b32.xlu0 %v1455, 126
        %v1693 = vpop.permute.xlu0 %1692
        %1694 = vrot.lane.b32.xlu0 %v1456, 126
        %v1695 = vpop.permute.xlu0 %1694
        %1696 = vrot.lane.b32.xlu0 %v1457, 126
        %v1697 = vpop.permute.xlu0 %1696
        %1698 = vrot.lane.b32.xlu0 %v1458, 126
        %v1699 = vpop.permute.xlu0 %1698
        %1700 = vrot.lane.b32.xlu0 %v1459, 126
        %v1701 = vpop.permute.xlu0 %1700
        %1702 = vrot.lane.b32.xlu0 %v1460, 126
        %v1703 = vpop.permute.xlu0 %1702
        %1704 = vrot.lane.b32.xlu0 %v1461, 126
        %v1705 = vpop.permute.xlu0 %1704
        %v1706 = vmul.f32 %v1540, %v1691
        %v1707 = vmul.f32 %v1540, %v1693
        %v1708 = vmul.f32 %v1540, %v1695
        %v1709 = vmul.f32 %v1540, %v1697
        %v1710 = vmul.f32 %v1540, %v1699
        %v1711 = vmul.f32 %v1540, %v1701
        %v1712 = vmul.f32 %v1540, %v1703
        %v1713 = vmul.f32 %v1540, %v1705
        %v1714 = vadd.f32 %v1682, %v1706
        %v1715 = vadd.f32 %v1683, %v1707
        %v1716 = vadd.f32 %v1684, %v1708
        %v1717 = vadd.f32 %v1685, %v1709
        %v1718 = vadd.f32 %v1686, %v1710
        %v1719 = vadd.f32 %v1687, %v1711
        %v1720 = vadd.f32 %v1688, %v1712
        %v1721 = vadd.f32 %v1689, %v1713
        %1722 = vrot.lane.b32.xlu0 %v1454, 125
        %v1723 = vpop.permute.xlu0 %1722
        %1724 = vrot.lane.b32.xlu0 %v1455, 125
        %v1725 = vpop.permute.xlu0 %1724
        %1726 = vrot.lane.b32.xlu0 %v1456, 125
        %v1727 = vpop.permute.xlu0 %1726
        %1728 = vrot.lane.b32.xlu0 %v1457, 125
        %v1729 = vpop.permute.xlu0 %1728
        %1730 = vrot.lane.b32.xlu0 %v1458, 125
        %v1731 = vpop.permute.xlu0 %1730
        %1732 = vrot.lane.b32.xlu0 %v1459, 125
        %v1733 = vpop.permute.xlu0 %1732
        %1734 = vrot.lane.b32.xlu0 %v1460, 125
        %v1735 = vpop.permute.xlu0 %1734
        %1736 = vrot.lane.b32.xlu0 %v1461, 125
        %v1737 = vpop.permute.xlu0 %1736
        %v1738 = vmul.f32 %v1553, %v1723
        %v1739 = vmul.f32 %v1553, %v1725
        %v1740 = vmul.f32 %v1553, %v1727
        %v1741 = vmul.f32 %v1553, %v1729
        %v1742 = vmul.f32 %v1553, %v1731
        %v1743 = vmul.f32 %v1553, %v1733
        %v1744 = vmul.f32 %v1553, %v1735
        %v1745 = vmul.f32 %v1553, %v1737
        %v1746 = vadd.f32 %v1714, %v1738
        %v1747 = vadd.f32 %v1715, %v1739
        %v1748 = vadd.f32 %v1716, %v1740
        %v1749 = vadd.f32 %v1717, %v1741
        %v1750 = vadd.f32 %v1718, %v1742
        %v1751 = vadd.f32 %v1719, %v1743
        %v1752 = vadd.f32 %v1720, %v1744
        %v1753 = vadd.f32 %v1721, %v1745
        %vm1754 = vcmask 1041408
        %v1755 = vsel %vm1754, %v1746, 0.0
        %v1756 = vrot.slane %v1755, 4
        %v1757 = vadd.f32 %v1755, %v1756
        %v1758 = vrot.slane %v1757, 2
        %v1759 = vadd.f32 %v1757, %v1758
        %v1760 = vrot.slane %v1759, 1
        %v1761 = vadd.f32 %v1759, %v1760
        %v1762 = vsel %vm1754, %v1747, 0.0
        %v1763 = vrot.slane %v1762, 4
        %v1764 = vadd.f32 %v1762, %v1763
        %v1765 = vrot.slane %v1764, 2
        %v1766 = vadd.f32 %v1764, %v1765
        %v1767 = vrot.slane %v1766, 1
        %v1768 = vadd.f32 %v1766, %v1767
        %v1769 = vsel %vm1754, %v1748, 0.0
        %v1770 = vrot.slane %v1769, 4
        %v1771 = vadd.f32 %v1769, %v1770
        %v1772 = vrot.slane %v1771, 2
        %v1773 = vadd.f32 %v1771, %v1772
        %v1774 = vrot.slane %v1773, 1
        %v1775 = vadd.f32 %v1773, %v1774
        %v1776 = vsel %vm1754, %v1749, 0.0
        %v1777 = vrot.slane %v1776, 4
        %v1778 = vadd.f32 %v1776, %v1777
        %v1779 = vrot.slane %v1778, 2
        %v1780 = vadd.f32 %v1778, %v1779
        %v1781 = vrot.slane %v1780, 1
        %v1782 = vadd.f32 %v1780, %v1781
        %v1783 = vsel %vm1754, %v1750, 0.0
        %v1784 = vrot.slane %v1783, 4
        %v1785 = vadd.f32 %v1783, %v1784
        %v1786 = vrot.slane %v1785, 2
        %v1787 = vadd.f32 %v1785, %v1786
        %v1788 = vrot.slane %v1787, 1
        %v1789 = vadd.f32 %v1787, %v1788
        %v1790 = vsel %vm1754, %v1751, 0.0
        %v1791 = vrot.slane %v1790, 4
        %v1792 = vadd.f32 %v1790, %v1791
        %v1793 = vrot.slane %v1792, 2
        %v1794 = vadd.f32 %v1792, %v1793
        %v1795 = vrot.slane %v1794, 1
        %v1796 = vadd.f32 %v1794, %v1795
        %v1797 = vsel %vm1754, %v1752, 0.0
        %v1798 = vrot.slane %v1797, 4
        %v1799 = vadd.f32 %v1797, %v1798
        %v1800 = vrot.slane %v1799, 2
        %v1801 = vadd.f32 %v1799, %v1800
        %v1802 = vrot.slane %v1801, 1
        %v1803 = vadd.f32 %v1801, %v1802
        %v1804 = vsel %vm1754, %v1753, 0.0
        %v1805 = vrot.slane %v1804, 4
        %v1806 = vadd.f32 %v1804, %v1805
        %v1807 = vrot.slane %v1806, 2
        %v1808 = vadd.f32 %v1806, %v1807
        %v1809 = vrot.slane %v1808, 1
        %v1810 = vadd.f32 %v1808, %v1809
        %s1811 = sld [smem:[#allocation2]]
        %v1812 = vstv %s1811
        %v1813 = vadd.f32 %v1761, %v1812
        %v1814 = vadd.f32 %v1768, %v1812
        %v1815 = vadd.f32 %v1775, %v1812
        %v1816 = vadd.f32 %v1782, %v1812
        %v1817 = vadd.f32 %v1789, %v1812
        %v1818 = vadd.f32 %v1796, %v1812
        %v1819 = vadd.f32 %v1803, %v1812
        %v1820 = vadd.f32 %v1810, %v1812
        %v1821 = vxor.u32 %v1813, 2147483648
        %v1822 = vxor.u32 %v1814, 2147483648
        %v1823 = vxor.u32 %v1815, 2147483648
        %v1824 = vxor.u32 %v1816, 2147483648
        %v1825 = vxor.u32 %v1817, 2147483648
        %v1826 = vxor.u32 %v1818, 2147483648
        %v1827 = vxor.u32 %v1819, 2147483648
        %v1828 = vxor.u32 %v1820, 2147483648
        %v1829 = vmul.f32 %v1821, 1.442695
        %v1830 = vpow.pop %v1829
        %v1831 = vmul.f32 %v1822, 1.442695
        %v1832 = vpow.pop %v1831
        %v1833 = vmul.f32 %v1823, 1.442695
        %v1834 = vpow.pop %v1833
        %v1835 = vmul.f32 %v1824, 1.442695
        %v1836 = vpow.pop %v1835
        %v1837 = vmul.f32 %v1825, 1.442695
        %v1838 = vpow.pop %v1837
        %v1839 = vmul.f32 %v1826, 1.442695
        %v1840 = vpow.pop %v1839
        %v1841 = vmul.f32 %v1827, 1.442695
        %v1842 = vpow.pop %v1841
        %v1843 = vmul.f32 %v1828, 1.442695
        %v1844 = vpow.pop %v1843
        %v1845 = vadd.f32 %v1830, 1.0
        %v1846 = vadd.f32 %v1832, 1.0
        %v1847 = vadd.f32 %v1834, 1.0
        %v1848 = vadd.f32 %v1836, 1.0
        %v1849 = vadd.f32 %v1838, 1.0
        %v1850 = vadd.f32 %v1840, 1.0
        %v1851 = vadd.f32 %v1842, 1.0
        %v1852 = vadd.f32 %v1844, 1.0
        %v1853 = vrcp.pop %v1845
        %v1854 = vmul.f32 1.0, %v1853
        %v1855 = vrcp.pop %v1846
        %v1856 = vmul.f32 1.0, %v1855
        %v1857 = vrcp.pop %v1847
        %v1858 = vmul.f32 1.0, %v1857
        %v1859 = vrcp.pop %v1848
        %v1860 = vmul.f32 1.0, %v1859
        %v1861 = vrcp.pop %v1849
        %v1862 = vmul.f32 1.0, %v1861
        %v1863 = vrcp.pop %v1850
        %v1864 = vmul.f32 1.0, %v1863
        %v1865 = vrcp.pop %v1851
        %v1866 = vmul.f32 1.0, %v1865
        %v1867 = vrcp.pop %v1852
        %v1868 = vmul.f32 1.0, %v1867
        %v1869 = vmul.f32 %v1268, %v1854
        %v1870 = vmul.f32 %v1269, %v1854
        %v1871 = vmul.f32 %v1270, %v1854
        %v1872 = vmul.f32 %v1271, %v1854
        %v1873 = vmul.f32 %v1272, %v1856
        %v1874 = vmul.f32 %v1273, %v1856
        %v1875 = vmul.f32 %v1274, %v1856
        %v1876 = vmul.f32 %v1275, %v1856
        %v1877 = vmul.f32 %v1276, %v1858
        %v1878 = vmul.f32 %v1277, %v1858
        %v1879 = vmul.f32 %v1278, %v1858
        %v1880 = vmul.f32 %v1279, %v1858
        %v1881 = vmul.f32 %v1280, %v1860
        %v1882 = vmul.f32 %v1281, %v1860
        %v1883 = vmul.f32 %v1282, %v1860
        %v1884 = vmul.f32 %v1283, %v1860
        %v1885 = vmul.f32 %v1284, %v1862
        %v1886 = vmul.f32 %v1285, %v1862
        %v1887 = vmul.f32 %v1286, %v1862
        %v1888 = vmul.f32 %v1287, %v1862
        %v1889 = vmul.f32 %v1288, %v1864
        %v1890 = vmul.f32 %v1289, %v1864
        %v1891 = vmul.f32 %v1290, %v1864
        %v1892 = vmul.f32 %v1291, %v1864
        %v1893 = vmul.f32 %v1292, %v1866
        %v1894 = vmul.f32 %v1293, %v1866
        %v1895 = vmul.f32 %v1294, %v1866
        %v1896 = vmul.f32 %v1295, %v1866
        %v1897 = vmul.f32 %v1296, %v1868
        %v1898 = vmul.f32 %v1297, %v1868
        %v1899 = vmul.f32 %v1298, %v1868
        %v1900 = vmul.f32 %v1299, %v1868
        %1901 = vst [vmem:[%s325] sm:$0xff] %v1869
        %1902 = vst [vmem:[%s325 + $0x8] sm:$0xff] %v1870
        %1903 = vst [vmem:[%s325 + $0x10] sm:$0xff] %v1871
        %1904 = vst [vmem:[%s325 + $0x18] sm:$0xff] %v1872
        %1905 = vst [vmem:[%s325 + $0x20] sm:$0xff] %v1873
        %1906 = vst [vmem:[%s325 + $0x28] sm:$0xff] %v1874
        %1907 = vst [vmem:[%s325 + $0x30] sm:$0xff] %v1875
        %1908 = vst [vmem:[%s325 + $0x38] sm:$0xff] %v1876
        %1909 = vst [vmem:[%s325 + $0x40] sm:$0xff] %v1877
        %1910 = vst [vmem:[%s325 + $0x48] sm:$0xff] %v1878
        %1911 = vst [vmem:[%s325 + $0x50] sm:$0xff] %v1879
        %1912 = vst [vmem:[%s325 + $0x58] sm:$0xff] %v1880
        %1913 = vst [vmem:[%s325 + $0x60] sm:$0xff] %v1881
        %1914 = vst [vmem:[%s325 + $0x68] sm:$0xff] %v1882
        %1915 = vst [vmem:[%s325 + $0x70] sm:$0xff] %v1883
        %1916 = vst [vmem:[%s325 + $0x78] sm:$0xff] %v1884
        %1917 = vst [vmem:[%s325 + $0x80] sm:$0xff] %v1885
        %1918 = vst [vmem:[%s325 + $0x88] sm:$0xff] %v1886
        %1919 = vst [vmem:[%s325 + $0x90] sm:$0xff] %v1887
        %1920 = vst [vmem:[%s325 + $0x98] sm:$0xff] %v1888
        %1921 = vst [vmem:[%s325 + $0xa0] sm:$0xff] %v1889
        %1922 = vst [vmem:[%s325 + $0xa8] sm:$0xff] %v1890
        %1923 = vst [vmem:[%s325 + $0xb0] sm:$0xff] %v1891
        %1924 = vst [vmem:[%s325 + $0xb8] sm:$0xff] %v1892
        %1925 = vst [vmem:[%s325 + $0xc0] sm:$0xff] %v1893
        %1926 = vst [vmem:[%s325 + $0xc8] sm:$0xff] %v1894
        %1927 = vst [vmem:[%s325 + $0xd0] sm:$0xff] %v1895
        %1928 = vst [vmem:[%s325 + $0xd8] sm:$0xff] %v1896
        %1929 = vst [vmem:[%s325 + $0xe0] sm:$0xff] %v1897
        %1930 = vst [vmem:[%s325 + $0xe8] sm:$0xff] %v1898
        %1931 = vst [vmem:[%s325 + $0xf0] sm:$0xff] %v1899
        %1932 = vst [vmem:[%s325 + $0xf8] sm:$0xff] %v1900
        %s1933 = sand.u32 %s187, 1
        %s1934 = scalar_lea.sflag [#allocation5], %s1933
        %s1935 = sand.u32 %s187, 1
        %s1936 = smul.addr %s1935, 256
        %s1937 = scalar_lea.vmem [#allocation10], %s1936
        // Predicated region
        $region61: #{tpu_custom_call.1} parent=47 // pred_check
          %p1938 = pneg %p197
        $region62: #{tpu_custom_call.1} parent=47 // pred_check_branch
          %1940 = sbr.rel (%p1938) target = $region64
        $region63: #{tpu_custom_call.1} parent=47 // pred_region
          %s1941 = smul.u32 8, %s27
          %s1943 = ssub.s32 4096, 4096
          %1944 = vsyncadd %s1934, %s1943
          %s1945 = smul.addr %s1941, 4
          %s1946 = smul.addr %s1945, 128
          %s1947 = scalar_lea.hbm %s7, %s1946
          %s1948 = sshll.u32 %s1937, 4
          %s1949 = int_to_ptr.vmem [resolvable:$true] %s1948
          %1954 = dma.vmem_to_hbm [thread:$0]  %s1949, 4096, %s1947, %s1934, 128, 128, 8
        $region64: #{tpu_custom_call.1} parent=47 // pred_fallthru
          _
      $region48: #{tpu_custom_call.1} parent=5 // pred_fallthru
        _
      %p1955 = scmp.le.s32.totalorder 2, %s22
      // Predicated region
      $region65: #{tpu_custom_call.1} parent=5 // pred_check
        %p1956 = pneg %p1955
      $region66: #{tpu_custom_call.1} parent=5 // pred_check_branch
        %1958 = sbr.rel (%p1956) target = $region68
      $region67: #{tpu_custom_call.1} parent=5 // pred_region
        %s1959 = ssub.s32 %s22, 2
        // Predicated region
        $region69: #{tpu_custom_call.1} parent=67 // pred_check
          %p1960 = pneg %p203
        $region70: #{tpu_custom_call.1} parent=67 // pred_check_branch
          %1962 = sbr.rel (%p1960) target = $region72
        $region71: #{tpu_custom_call.1} parent=67 // pred_region
          %s1963 = sand.u32 %s188, 1
          %s1964 = scalar_lea.sflag [#allocation5], %s1963
          %s1965 = sand.u32 %s188, 1
          %s1966 = smul.addr %s1965, 256
          %s1967 = scalar_lea.vmem [#allocation10], %s1966
          %1968 = dma.done %s1964, 4096
        $region72: #{tpu_custom_call.1} parent=67 // pred_fallthru
          _
      $region68: #{tpu_custom_call.1} parent=5 // pred_fallthru
        _
    $region6: #{tpu_custom_call.1} parent=1 // loop_footer
      %s26 = sadd.s32 1, %s22
    $region7: #{tpu_custom_call.1} parent=1 // loop_footer_branch
      %21 = sbr.rel target = $region3
    $region8: #{tpu_custom_call.1} parent=1 // loop_exit
      _
    %1969 = vsyncpa [#allocation4], 1
    %s1970 = scalar_lea.sflag [#allocation4], 1
    %1971 = vsyncpa %s1970, 1
    %1972 = vsyncpa [#allocation5], 1
    %s1973 = scalar_lea.sflag [#allocation5], 1
    %1974 = vsyncpa %s1973, 1
    %1975 = vsyncpa [#allocation6], 1
    %s1976 = scalar_lea.sflag [#allocation6], 1
    %1977 = vsyncpa %s1976, 1
    %1978 = vsyncpa [#allocation9], 1

</llo_original>
